<compile_context>
chip_gen: v7x
topology: tpu7x:2x2x1
jax: 0.10.0
libtpu: 0.0.40
codegen_flags: <defaults>
</compile_context>

<pallas_src>
import functools

import jax
import jax.numpy as jnp
from jax import lax
from jax.experimental import pallas as pl
from jax.experimental.pallas import tpu as pltpu


# ----------------------------- Pallas kernel --------------------------------

def _attention_kernel(xp_ref, w_qkv_ref, b_qkv_ref, mask_ref, wo_ref, bo_ref,
                      o_ref, patch_ref, *, B, H, W, K, C, inner, scale):
    """Whole Attention forward (all batch elements) in one invocation.

    xp_ref    : (B, H+K-1, W+K-1, C) zero-padded channels-last input (f32)
    w_qkv_ref : (K*K*C, 3*inner) composed dwconv+BN+1x1 weights [q|k|v] (bf16)
    b_qkv_ref : (1, 3*inner)     composed bias (f32)
    mask_ref  : (inner, inner)   head-block 0/1 mask (f32)
    wo_ref    : (inner, C)       to_out 1x1 weight (bf16)
    bo_ref    : (1, C)           to_out bias (f32)
    o_ref     : (B, C, N)        output, channels-major (f32)
    patch_ref : (B*N, K*K*C)     VMEM im2col scratch (f32)
    """
    N = H * W
    M = B * N

    # ---- im2col: scatter the K*K shifted taps into the patch scratch --------
    xp = xp_ref[...]                                      # (B, Hp, Wp, C) f32
    for t in range(K * K):                                # static K*K unroll
        i, j = divmod(t, K)
        tap = xp[:, i:i + H, j:j + W, :].reshape(M, C)    # layout-preserving (W == 8)
        patch_ref[:, t * C:(t + 1) * C] = tap

    patches = patch_ref[...].astype(jnp.bfloat16)         # (M, K*K*C)

    # ---- depthwise conv + BN + 1x1 proj for q|k|v: one MXU matmul -----------
    qkv = (jnp.dot(patches, w_qkv_ref[...], preferred_element_type=jnp.float32)
           + b_qkv_ref[...])                              # (M, 3*inner) f32
    q = qkv[:, :inner]
    k = qkv[:, inner:2 * inner]
    v = qkv[:, 2 * inner:]

    # ---- attention, reassociated so no NxN matrix is ever formed ------------
    qk = q * k                                            # f32 (VPU)
    s = scale * jnp.sum(qk, keepdims=True)                # (1,1) global M0.sum()
    mask = mask_ref[...]                                  # (inner, inner) f32
    # r = per-head (q*k) channel-sum, broadcast back to channels (f32 matmul).
    r = jnp.dot(qk, mask, preferred_element_type=jnp.float32)   # (M, inner)

    qb = q.astype(jnp.bfloat16)
    kb = k.astype(jnp.bfloat16)
    vb = v.astype(jnp.bfloat16)
    terms = []
    for b in range(B):                                    # k^T v must not mix batches
        rows = slice(b * N, (b + 1) * N)
        ktv = lax.dot_general(kb[rows], vb[rows], (((0,), (0,)), ((), ())),
                              preferred_element_type=jnp.float32)   # (inner, inner)
        ktv_h = (ktv * mask).astype(jnp.bfloat16)         # keep per-head blocks only
        terms.append(jnp.dot(qb[rows], ktv_h, preferred_element_type=jnp.float32))
    term = jnp.concatenate(terms, axis=0)                 # (M, inner)

    attn = s * v + scale * (term - r * v)                 # (M, inner) f32

    # ---- to_out 1x1 conv (+bias); Dropout(p=0.0) == identity ----------------
    out = (jnp.dot(attn.astype(jnp.bfloat16), wo_ref[...],
                   preferred_element_type=jnp.float32) + bo_ref[...])   # (M, C)

    # ---- lane-dense, NCHW-ready store: (C, N) per batch, transposed in-kernel
    for b in range(B):
        o_ref[b] = out[b * N:(b + 1) * N, :].T            # (C, N)


# ----------------------------- wrapper ---------------------------------------

def attention_forward(x_nchw, params, heads, dim_head, proj_kernel):
    B, C, H, W = x_nchw.shape
    inner = heads * dim_head
    N = H * W
    K = proj_kernel
    p = K // 2
    Hp, Wp = H + 2 * p, W + 2 * p
    scale = dim_head ** (-0.5)

    # NCHW -> channels-last + zero-pad: two tiny XLA ops (fused).
    # TODO(synk): fold the layout change / halo padding into the kernel for
    # production-sized feature maps (row-strip blocking with K-1 halo).
    x = jnp.transpose(x_nchw, (0, 2, 3, 1)).astype(jnp.float32)
    xp = jnp.pad(x, ((0, 0), (p, p), (p, p), (0, 0)))

    pq, pkv, po = params['to_q'], params['to_kv'], params['to_out']

    # Compose depthwise conv taps + eval-mode BatchNorm + 1x1 projection into a
    # single im2col weight  W[(t,c), m] = dw[t,c]*bn_scale[c]*pw[c,m]
    # and a bias  b[m] = bn_shift @ pw  (both convs are bias-free in the module).
    def compose(par):
        a = par['dw_w'] * par['bn_scale'][None, :]                         # (K*K, C)
        w = (a[:, :, None] * par['pw_w'][None, :, :]).reshape(K * K * C, -1)
        b = par['bn_shift'] @ par['pw_w']
        return w, b

    wq, bq = compose(pq)                      # (K*K*C, inner)
    wkv, bkv = compose(pkv)                   # (K*K*C, 2*inner), columns = [k | v]
    w_qkv = jnp.concatenate([wq, wkv], axis=1).astype(jnp.bfloat16)        # [q|k|v]
    b_qkv = jnp.concatenate([bq, bkv]).reshape(1, 3 * inner)

    # Head-block mask: 1 where channels i and j belong to the same head.
    hid = jnp.arange(inner, dtype=jnp.int32) // dim_head
    mask = (hid[:, None] == hid[None, :]).astype(jnp.float32)

    kernel = functools.partial(_attention_kernel, B=B, H=H, W=W, K=K, C=C,
                               inner=inner, scale=scale)
    out = pl.pallas_call(
        kernel,
        grid=(1,),
        in_specs=[
            pl.BlockSpec((B, Hp, Wp, C), lambda i: (0, 0, 0, 0)),      # padded input
            pl.BlockSpec((K * K * C, 3 * inner), lambda i: (0, 0)),    # composed W
            pl.BlockSpec((1, 3 * inner), lambda i: (0, 0)),            # composed bias
            pl.BlockSpec((inner, inner), lambda i: (0, 0)),            # head mask
            pl.BlockSpec((inner, C), lambda i: (0, 0)),                # to_out weight
            pl.BlockSpec((1, C), lambda i: (0, 0)),                    # to_out bias
        ],
        out_specs=pl.BlockSpec((B, C, N), lambda i: (0, 0, 0)),
        out_shape=jax.ShapeDtypeStruct((B, C, N), jnp.float32),
        scratch_shapes=[pltpu.VMEM((B * N, K * K * C), jnp.float32)],
        compiler_params=pltpu.CompilerParams(
            dimension_semantics=("arbitrary",)),
    )(xp, w_qkv, b_qkv, mask,
      po['w'].astype(jnp.bfloat16), po['b'].reshape(1, C))

    # (B, C, N) -> (B, C, H, W): reshape only — the transpose already happened
    # inside the kernel (lane-dense store).
    return out.reshape(B, C, H, W)


# ----------------------------- reference (pure JAX) --------------------------

def reference_forward(x_nchw, params, heads, dim_head, proj_kernel):
    """Straight transcription of the PyTorch module (eval mode), high precision."""
    B, C, H, W = x_nchw.shape
    inner = heads * dim_head
    D = dim_head
    N = H * W
    K = proj_kernel
    p = K // 2
    scale = dim_head ** (-0.5)

    x = jnp.transpose(x_nchw, (0, 2, 3, 1)).astype(jnp.float32)
    xp = jnp.pad(x, ((0, 0), (p, p), (p, p), (0, 0)))

    def branch(par):
        acc = jnp.zeros((B, H, W, C), jnp.float32)
        for i in range(K):
            for j in range(K):
                acc = acc + xp[:, i:i + H, j:j + W, :] * par['dw_w'][i * K + j]
        y = acc * par['bn_scale'] + par['bn_shift']
        return jnp.einsum('bhwc,cd->bhwd', y, par['pw_w'], precision='highest')

    qm = branch(params['to_q'])
    kvm = branch(params['to_kv'])
    km, vm = kvm[..., :inner], kvm[..., inner:]

    def to_heads(t):  # 'b x y (h d) -> (b h) (x y) d'
        t = t.reshape(B, N, heads, D)
        return jnp.transpose(t, (0, 2, 1, 3)).reshape(B * heads, N, D)

    q, k, v = map(to_heads, (qm, km, vm))
    r = jnp.sum(q * k, axis=-1)                                        # (BH, N)
    M0 = scale * r[:, :, None] * jnp.eye(N, dtype=jnp.float32)
    qkT = jnp.einsum('bnd,bmd->bnm', q, k, precision='highest')
    kqT = jnp.einsum('bnd,bmd->bnm', k, q, precision='highest')
    M1 = 0.5 * (qkT + kqT) * scale
    M2 = 0.5 * (qkT - kqT) * scale
    out = (jnp.sum(M0) * v
           + jnp.einsum('bnm,bmd->bnd', M1 - M0, v, precision='highest')
           + jnp.einsum('bnm,bmd->bnd', M2, v, precision='highest'))
    out = out.reshape(B, heads, H, W, D)
    out = jnp.transpose(out, (0, 2, 3, 1, 4)).reshape(B, H, W, inner)
    outf = jnp.einsum('bhwc,cd->bhwd', out, params['to_out']['w'],
                      precision='highest') + params['to_out']['b']
    return jnp.transpose(outf, (0, 3, 1, 2))


# ----------------------------- parameters -----------------------------------

def init_params(key, dim, heads, dim_head, proj_kernel):
    inner = heads * dim_head
    K = proj_kernel
    eps = 1e-5
    keys = iter(jax.random.split(key, 20))

    def bn_fold():
        # BatchNorm2d in eval mode folded into per-channel scale/shift.
        gamma = 1.0 + 0.1 * jax.random.normal(next(keys), (dim,), jnp.float32)
        beta = 0.1 * jax.random.normal(next(keys), (dim,), jnp.float32)
        mean = 0.1 * jax.random.normal(next(keys), (dim,), jnp.float32)
        var = jax.random.uniform(next(keys), (dim,), jnp.float32,
                                 minval=0.5, maxval=1.5)
        scale = gamma * lax.rsqrt(var + eps)
        return scale, beta - mean * scale

    def dw_branch(cout):
        dw_w = 0.1 * jax.random.normal(next(keys), (K * K, dim), jnp.float32)
        bn_scale, bn_shift = bn_fold()
        pw_w = 0.1 * jax.random.normal(next(keys), (dim, cout), jnp.float32)
        return dict(dw_w=dw_w, bn_scale=bn_scale, bn_shift=bn_shift, pw_w=pw_w)

    return {
        'to_q': dw_branch(inner),                 # bias=False
        'to_kv': dw_branch(2 * inner),            # bias=False
        'to_out': dict(
            w=0.1 * jax.random.normal(next(keys), (inner, dim), jnp.float32),
            b=0.1 * jax.random.normal(next(keys), (dim,), jnp.float32)),
    }


# ----------------------------- main ------------------------------------------

if __name__ == "__main__":
    B, dim, H, W = 2, 16, 8, 8
    heads, dim_head, proj_kernel = 2, 16, 3       # inner_dim = 32, seq N = 64

    key = jax.random.PRNGKey(0)
    kx, kp = jax.random.split(key)
    x = jax.random.normal(kx, (B, dim, H, W), jnp.float32)            # NCHW like PyTorch
    params = init_params(kp, dim, heads, dim_head, proj_kernel)

    fwd = jax.jit(functools.partial(attention_forward, heads=heads,
                                    dim_head=dim_head, proj_kernel=proj_kernel))
    out = jax.block_until_ready(fwd(x, params))
    assert out.shape == (B, dim, H, W), out.shape
    assert bool(jnp.all(jnp.isfinite(out)))

    # Validate the fused/reassociated math against a straight transcription of
    # the PyTorch module (bf16 MXU inputs -> modest tolerance).
    ref = reference_forward(x, params, heads, dim_head, proj_kernel)
    max_err = float(jnp.max(jnp.abs(out - ref)))
    assert max_err < 2e-2, f"max abs error vs reference: {max_err}"

    print("KERNEL_OK")
</pallas_src>

<mosaic_0001>
module attributes {stable_mosaic.version = 11 : i64} {
  func.func @_attention_kernel(%arg0: i32, %arg1: memref<2x10x10x16xf32, #tpu.memory_space<vmem>>, %arg2: memref<144x96xbf16, #tpu.memory_space<vmem>>, %arg3: memref<1x96xf32, #tpu.memory_space<vmem>>, %arg4: memref<32x32xf32, #tpu.memory_space<vmem>>, %arg5: memref<32x16xbf16, #tpu.memory_space<vmem>>, %arg6: memref<1x16xf32, #tpu.memory_space<vmem>>, %arg7: memref<2x16x64xf32, #tpu.memory_space<vmem>>, %arg8: memref<128x144xf32, #tpu.memory_space<vmem>>) attributes {dimension_semantics = [#tpu.dimension_semantics<arbitrary>], iteration_bounds = array<i64: 1>, scalar_prefetch = 0 : i64, scratch_operands = 1 : i64, tpu.core_type = #tpu.core_type<tc>, window_params = [{pipeline_mode = #tpu.pipeline_mode<synchronous>, transform_indices = @transform_0, window_bounds = array<i64: 2, 10, 10, 16>}, {pipeline_mode = #tpu.pipeline_mode<synchronous>, transform_indices = @transform_1, window_bounds = array<i64: 144, 96>}, {pipeline_mode = #tpu.pipeline_mode<synchronous>, transform_indices = @transform_2, window_bounds = array<i64: 1, 96>}, {pipeline_mode = #tpu.pipeline_mode<synchronous>, transform_indices = @transform_3, window_bounds = array<i64: 32, 32>}, {pipeline_mode = #tpu.pipeline_mode<synchronous>, transform_indices = @transform_4, window_bounds = array<i64: 32, 16>}, {pipeline_mode = #tpu.pipeline_mode<synchronous>, transform_indices = @transform_5, window_bounds = array<i64: 1, 16>}, {pipeline_mode = #tpu.pipeline_mode<synchronous>, transform_indices = @transform_6, window_bounds = array<i64: 2, 16, 64>}]} {
    %c0 = arith.constant 0 : index
    %c0_0 = arith.constant 0 : index
    %c0_1 = arith.constant 0 : index
    %c0_2 = arith.constant 0 : index
    %0 = vector.load %arg1[%c0, %c0_0, %c0_1, %c0_2] : memref<2x10x10x16xf32, #tpu.memory_space<vmem>>, vector<2x10x10x16xf32>
    %1 = vector.extract_strided_slice %0 {offsets = [0, 0, 0, 0], sizes = [2, 8, 8, 16], strides = [1, 1, 1, 1]} : vector<2x10x10x16xf32> to vector<2x8x8x16xf32>
    %2 = vector.shape_cast %1 : vector<2x8x8x16xf32> to vector<128x16xf32>
    %c0_3 = arith.constant 0 : index
    %c0_4 = arith.constant 0 : index
    %3 = vector.load %arg8[%c0_3, %c0_4] : memref<128x144xf32, #tpu.memory_space<vmem>>, vector<128x16xf32>
    tpu.vector_store %arg8[%c0_3, %c0_4], %2 {strides = array<i32>} : memref<128x144xf32, #tpu.memory_space<vmem>>, vector<128x16xf32>,
    %4 = vector.extract_strided_slice %0 {offsets = [0, 0, 1, 0], sizes = [2, 8, 8, 16], strides = [1, 1, 1, 1]} : vector<2x10x10x16xf32> to vector<2x8x8x16xf32>
    %5 = vector.shape_cast %4 : vector<2x8x8x16xf32> to vector<128x16xf32>
    %c0_5 = arith.constant 0 : index
    %c16 = arith.constant 16 : index
    %6 = vector.load %arg8[%c0_5, %c16] : memref<128x144xf32, #tpu.memory_space<vmem>>, vector<128x16xf32>
    tpu.vector_store %arg8[%c0_5, %c16], %5 {strides = array<i32>} : memref<128x144xf32, #tpu.memory_space<vmem>>, vector<128x16xf32>,
    %7 = vector.extract_strided_slice %0 {offsets = [0, 0, 2, 0], sizes = [2, 8, 8, 16], strides = [1, 1, 1, 1]} : vector<2x10x10x16xf32> to vector<2x8x8x16xf32>
    %8 = vector.shape_cast %7 : vector<2x8x8x16xf32> to vector<128x16xf32>
    %c0_6 = arith.constant 0 : index
    %c32 = arith.constant 32 : index
    %9 = vector.load %arg8[%c0_6, %c32] : memref<128x144xf32, #tpu.memory_space<vmem>>, vector<128x16xf32>
    tpu.vector_store %arg8[%c0_6, %c32], %8 {strides = array<i32>} : memref<128x144xf32, #tpu.memory_space<vmem>>, vector<128x16xf32>,
    %10 = vector.extract_strided_slice %0 {offsets = [0, 1, 0, 0], sizes = [2, 8, 8, 16], strides = [1, 1, 1, 1]} : vector<2x10x10x16xf32> to vector<2x8x8x16xf32>
    %11 = vector.shape_cast %10 : vector<2x8x8x16xf32> to vector<128x16xf32>
    %c0_7 = arith.constant 0 : index
    %c48 = arith.constant 48 : index
    %12 = vector.load %arg8[%c0_7, %c48] : memref<128x144xf32, #tpu.memory_space<vmem>>, vector<128x16xf32>
    tpu.vector_store %arg8[%c0_7, %c48], %11 {strides = array<i32>} : memref<128x144xf32, #tpu.memory_space<vmem>>, vector<128x16xf32>,
    %13 = vector.extract_strided_slice %0 {offsets = [0, 1, 1, 0], sizes = [2, 8, 8, 16], strides = [1, 1, 1, 1]} : vector<2x10x10x16xf32> to vector<2x8x8x16xf32>
    %14 = vector.shape_cast %13 : vector<2x8x8x16xf32> to vector<128x16xf32>
    %c0_8 = arith.constant 0 : index
    %c64 = arith.constant 64 : index
    %15 = vector.load %arg8[%c0_8, %c64] : memref<128x144xf32, #tpu.memory_space<vmem>>, vector<128x16xf32>
    tpu.vector_store %arg8[%c0_8, %c64], %14 {strides = array<i32>} : memref<128x144xf32, #tpu.memory_space<vmem>>, vector<128x16xf32>,
    %16 = vector.extract_strided_slice %0 {offsets = [0, 1, 2, 0], sizes = [2, 8, 8, 16], strides = [1, 1, 1, 1]} : vector<2x10x10x16xf32> to vector<2x8x8x16xf32>
    %17 = vector.shape_cast %16 : vector<2x8x8x16xf32> to vector<128x16xf32>
    %c0_9 = arith.constant 0 : index
    %c80 = arith.constant 80 : index
    %18 = vector.load %arg8[%c0_9, %c80] : memref<128x144xf32, #tpu.memory_space<vmem>>, vector<128x16xf32>
    tpu.vector_store %arg8[%c0_9, %c80], %17 {strides = array<i32>} : memref<128x144xf32, #tpu.memory_space<vmem>>, vector<128x16xf32>,
    %19 = vector.extract_strided_slice %0 {offsets = [0, 2, 0, 0], sizes = [2, 8, 8, 16], strides = [1, 1, 1, 1]} : vector<2x10x10x16xf32> to vector<2x8x8x16xf32>
    %20 = vector.shape_cast %19 : vector<2x8x8x16xf32> to vector<128x16xf32>
    %c0_10 = arith.constant 0 : index
    %c96 = arith.constant 96 : index
    %21 = vector.load %arg8[%c0_10, %c96] : memref<128x144xf32, #tpu.memory_space<vmem>>, vector<128x16xf32>
    tpu.vector_store %arg8[%c0_10, %c96], %20 {strides = array<i32>} : memref<128x144xf32, #tpu.memory_space<vmem>>, vector<128x16xf32>,
    %22 = vector.extract_strided_slice %0 {offsets = [0, 2, 1, 0], sizes = [2, 8, 8, 16], strides = [1, 1, 1, 1]} : vector<2x10x10x16xf32> to vector<2x8x8x16xf32>
    %23 = vector.shape_cast %22 : vector<2x8x8x16xf32> to vector<128x16xf32>
    %c0_11 = arith.constant 0 : index
    %c112 = arith.constant 112 : index
    %24 = vector.load %arg8[%c0_11, %c112] : memref<128x144xf32, #tpu.memory_space<vmem>>, vector<128x16xf32>
    tpu.vector_store %arg8[%c0_11, %c112], %23 {strides = array<i32>} : memref<128x144xf32, #tpu.memory_space<vmem>>, vector<128x16xf32>,
    %25 = vector.extract_strided_slice %0 {offsets = [0, 2, 2, 0], sizes = [2, 8, 8, 16], strides = [1, 1, 1, 1]} : vector<2x10x10x16xf32> to vector<2x8x8x16xf32>
    %26 = vector.shape_cast %25 : vector<2x8x8x16xf32> to vector<128x16xf32>
    %c0_12 = arith.constant 0 : index
    %c128 = arith.constant 128 : index
    %27 = vector.load %arg8[%c0_12, %c128] : memref<128x144xf32, #tpu.memory_space<vmem>>, vector<128x16xf32>
    tpu.vector_store %arg8[%c0_12, %c128], %26 {strides = array<i32>} : memref<128x144xf32, #tpu.memory_space<vmem>>, vector<128x16xf32>,
    %c0_13 = arith.constant 0 : index
    %c0_14 = arith.constant 0 : index
    %28 = vector.load %arg8[%c0_13, %c0_14] : memref<128x144xf32, #tpu.memory_space<vmem>>, vector<128x144xf32>
    %29 = arith.truncf %28 : vector<128x144xf32> to vector<128x144xbf16>
    %c0_15 = arith.constant 0 : index
    %c0_16 = arith.constant 0 : index
    %30 = vector.load %arg2[%c0_15, %c0_16] : memref<144x96xbf16, #tpu.memory_space<vmem>>, vector<144x96xbf16>
    %cst = arith.constant dense<0.000000e+00> : vector<128x96xf32>
    %31 = tpu.matmul %29, %30, %cst {dimension_numbers = #tpu.dot_dimension_numbers<[1], [0], [0], [1], [0, 0, 1, 1], [], []>} : vector<128x144xbf16>, vector<144x96xbf16>, vector<128x96xf32> -> vector<128x96xf32>
    %c0_17 = arith.constant 0 : index
    %c0_18 = arith.constant 0 : index
    %32 = vector.load %arg3[%c0_17, %c0_18] : memref<1x96xf32, #tpu.memory_space<vmem>>, vector<1x96xf32>
    %33 = vector.broadcast %32 : vector<1x96xf32> to vector<128x96xf32>
    %34 = arith.addf %31, %33 : vector<128x96xf32>
    %35 = vector.extract_strided_slice %34 {offsets = [0, 0], sizes = [128, 32], strides = [1, 1]} : vector<128x96xf32> to vector<128x32xf32>
    %36 = vector.extract_strided_slice %34 {offsets = [0, 32], sizes = [128, 32], strides = [1, 1]} : vector<128x96xf32> to vector<128x32xf32>
    %37 = vector.extract_strided_slice %34 {offsets = [0, 64], sizes = [128, 32], strides = [1, 1]} : vector<128x96xf32> to vector<128x32xf32>
    %38 = arith.mulf %35, %36 : vector<128x32xf32>
    %39 = vector.shape_cast %38 : vector<128x32xf32> to vector<1x128x32xf32>
    %cst_19 = arith.constant dense<0.000000e+00> : vector<1xf32>
    %40 = vector.multi_reduction <add>, %39, %cst_19 [1, 2] : vector<1x128x32xf32> to vector<1xf32>
    %41 = vector.shape_cast %40 : vector<1xf32> to vector<1x1x1xf32>
    %42 = vector.extract %41[0, 0, 0] : f32 from vector<1x1x1xf32>
    %43 = vector.broadcast %42 : f32 to vector<1x1xf32>
    %cst_20 = arith.constant 2.500000e-01 : f32
    %44 = vector.broadcast %cst_20 : f32 to vector<1x1xf32>
    %45 = arith.mulf %44, %43 : vector<1x1xf32>
    %c0_21 = arith.constant 0 : index
    %c0_22 = arith.constant 0 : index
    %46 = vector.load %arg4[%c0_21, %c0_22] : memref<32x32xf32, #tpu.memory_space<vmem>>, vector<32x32xf32>
    %cst_23 = arith.constant dense<0.000000e+00> : vector<128x32xf32>
    %47 = tpu.matmul %38, %46, %cst_23 {dimension_numbers = #tpu.dot_dimension_numbers<[1], [0], [0], [1], [0, 0, 1, 1], [], []>} : vector<128x32xf32>, vector<32x32xf32>, vector<128x32xf32> -> vector<128x32xf32>
    %48 = arith.truncf %35 : vector<128x32xf32> to vector<128x32xbf16>
    %49 = arith.truncf %36 : vector<128x32xf32> to vector<128x32xbf16>
    %50 = arith.truncf %37 : vector<128x32xf32> to vector<128x32xbf16>
    %51 = vector.extract_strided_slice %49 {offsets = [0, 0], sizes = [64, 32], strides = [1, 1]} : vector<128x32xbf16> to vector<64x32xbf16>
    %52 = vector.extract_strided_slice %50 {offsets = [0, 0], sizes = [64, 32], strides = [1, 1]} : vector<128x32xbf16> to vector<64x32xbf16>
    %cst_24 = arith.constant dense<0.000000e+00> : vector<32x32xf32>
    %53 = tpu.matmul %51, %52, %cst_24 {dimension_numbers = #tpu.dot_dimension_numbers<[0], [0], [1], [1], [0, 1, 1, 1], [], []>} : vector<64x32xbf16>, vector<64x32xbf16>, vector<32x32xf32> -> vector<32x32xf32>
    %54 = arith.mulf %53, %46 : vector<32x32xf32>
    %55 = arith.truncf %54 : vector<32x32xf32> to vector<32x32xbf16>
    %56 = vector.extract_strided_slice %48 {offsets = [0, 0], sizes = [64, 32], strides = [1, 1]} : vector<128x32xbf16> to vector<64x32xbf16>
    %cst_25 = arith.constant dense<0.000000e+00> : vector<64x32xf32>
    %57 = tpu.matmul %56, %55, %cst_25 {dimension_numbers = #tpu.dot_dimension_numbers<[1], [0], [0], [1], [0, 0, 1, 1], [], []>} : vector<64x32xbf16>, vector<32x32xbf16>, vector<64x32xf32> -> vector<64x32xf32>
    %58 = vector.extract_strided_slice %49 {offsets = [64, 0], sizes = [64, 32], strides = [1, 1]} : vector<128x32xbf16> to vector<64x32xbf16>
    %59 = vector.extract_strided_slice %50 {offsets = [64, 0], sizes = [64, 32], strides = [1, 1]} : vector<128x32xbf16> to vector<64x32xbf16>
    %cst_26 = arith.constant dense<0.000000e+00> : vector<32x32xf32>
    %60 = tpu.matmul %58, %59, %cst_26 {dimension_numbers = #tpu.dot_dimension_numbers<[0], [0], [1], [1], [0, 1, 1, 1], [], []>} : vector<64x32xbf16>, vector<64x32xbf16>, vector<32x32xf32> -> vector<32x32xf32>
    %61 = arith.mulf %60, %46 : vector<32x32xf32>
    %62 = arith.truncf %61 : vector<32x32xf32> to vector<32x32xbf16>
    %63 = vector.extract_strided_slice %48 {offsets = [64, 0], sizes = [64, 32], strides = [1, 1]} : vector<128x32xbf16> to vector<64x32xbf16>
    %cst_27 = arith.constant dense<0.000000e+00> : vector<64x32xf32>
    %64 = tpu.matmul %63, %62, %cst_27 {dimension_numbers = #tpu.dot_dimension_numbers<[1], [0], [0], [1], [0, 0, 1, 1], [], []>} : vector<64x32xbf16>, vector<32x32xbf16>, vector<64x32xf32> -> vector<64x32xf32>
    %65 = tpu.concatenate %57, %64 in 0 : vector<64x32xf32>, vector<64x32xf32> -> vector<128x32xf32>
    %66 = vector.broadcast %45 : vector<1x1xf32> to vector<128x32xf32>
    %67 = arith.mulf %66, %37 : vector<128x32xf32>
    %68 = arith.mulf %47, %37 : vector<128x32xf32>
    %69 = arith.subf %65, %68 : vector<128x32xf32>
    %cst_28 = arith.constant 2.500000e-01 : f32
    %70 = vector.broadcast %cst_28 : f32 to vector<128x32xf32>
    %71 = arith.mulf %70, %69 : vector<128x32xf32>
    %72 = arith.addf %67, %71 : vector<128x32xf32>
    %73 = arith.truncf %72 : vector<128x32xf32> to vector<128x32xbf16>
    %c0_29 = arith.constant 0 : index
    %c0_30 = arith.constant 0 : index
    %74 = vector.load %arg5[%c0_29, %c0_30] : memref<32x16xbf16, #tpu.memory_space<vmem>>, vector<32x16xbf16>
    %cst_31 = arith.constant dense<0.000000e+00> : vector<128x16xf32>
    %75 = tpu.matmul %73, %74, %cst_31 {dimension_numbers = #tpu.dot_dimension_numbers<[1], [0], [0], [1], [0, 0, 1, 1], [], []>} : vector<128x32xbf16>, vector<32x16xbf16>, vector<128x16xf32> -> vector<128x16xf32>
    %c0_32 = arith.constant 0 : index
    %c0_33 = arith.constant 0 : index
    %76 = vector.load %arg6[%c0_32, %c0_33] : memref<1x16xf32, #tpu.memory_space<vmem>>, vector<1x16xf32>
    %77 = vector.broadcast %76 : vector<1x16xf32> to vector<128x16xf32>
    %78 = arith.addf %75, %77 : vector<128x16xf32>
    %79 = vector.extract_strided_slice %78 {offsets = [0, 0], sizes = [64, 16], strides = [1, 1]} : vector<128x16xf32> to vector<64x16xf32>
    %80 = tpu.transpose %79, [1, 0] : vector<64x16xf32> -> vector<16x64xf32>
    %c0_34 = arith.constant 0 : index
    %c0_35 = arith.constant 0 : index
    %c0_36 = arith.constant 0 : index
    %81 = vector.load %arg7[%c0_34, %c0_35, %c0_36] : memref<2x16x64xf32, #tpu.memory_space<vmem>>, vector<1x16x64xf32>
    %82 = vector.shape_cast %81 : vector<1x16x64xf32> to vector<16x64xf32>
    %83 = vector.shape_cast %80 : vector<16x64xf32> to vector<1x16x64xf32>
    tpu.vector_store %arg7[%c0_34, %c0_35, %c0_36], %83 {strides = array<i32>} : memref<2x16x64xf32, #tpu.memory_space<vmem>>, vector<1x16x64xf32>,
    %84 = vector.extract_strided_slice %78 {offsets = [64, 0], sizes = [64, 16], strides = [1, 1]} : vector<128x16xf32> to vector<64x16xf32>
    %85 = tpu.transpose %84, [1, 0] : vector<64x16xf32> -> vector<16x64xf32>
    %c1 = arith.constant 1 : index
    %c0_37 = arith.constant 0 : index
    %c0_38 = arith.constant 0 : index
    %86 = vector.load %arg7[%c1, %c0_37, %c0_38] : memref<2x16x64xf32, #tpu.memory_space<vmem>>, vector<1x16x64xf32>
    %87 = vector.shape_cast %86 : vector<1x16x64xf32> to vector<16x64xf32>
    %88 = vector.shape_cast %85 : vector<16x64xf32> to vector<1x16x64xf32>
    tpu.vector_store %arg7[%c1, %c0_37, %c0_38], %88 {strides = array<i32>} : memref<2x16x64xf32, #tpu.memory_space<vmem>>, vector<1x16x64xf32>,
    return
  }
  func.func @transform_0(%arg0: i32) -> (i32, i32, i32, i32) {
    %c0_i32 = arith.constant 0 : i32
    %c0_i32_0 = arith.constant 0 : i32
    %c0_i32_1 = arith.constant 0 : i32
    %c0_i32_2 = arith.constant 0 : i32
    %c0_i32_3 = arith.constant 0 : i32
    return %c0_i32, %c0_i32_0, %c0_i32_1, %c0_i32_2 : i32, i32, i32, i32
  }
  func.func @transform_1(%arg0: i32) -> (i32, i32) {
    %c0_i32 = arith.constant 0 : i32
    %c0_i32_0 = arith.constant 0 : i32
    %c0_i32_1 = arith.constant 0 : i32
    return %c0_i32, %c0_i32_0 : i32, i32
  }
  func.func @transform_2(%arg0: i32) -> (i32, i32) {
    %c0_i32 = arith.constant 0 : i32
    %c0_i32_0 = arith.constant 0 : i32
    %c0_i32_1 = arith.constant 0 : i32
    return %c0_i32, %c0_i32_0 : i32, i32
  }
  func.func @transform_3(%arg0: i32) -> (i32, i32) {
    %c0_i32 = arith.constant 0 : i32
    %c0_i32_0 = arith.constant 0 : i32
    %c0_i32_1 = arith.constant 0 : i32
    return %c0_i32, %c0_i32_0 : i32, i32
  }
  func.func @transform_4(%arg0: i32) -> (i32, i32) {
    %c0_i32 = arith.constant 0 : i32
    %c0_i32_0 = arith.constant 0 : i32
    %c0_i32_1 = arith.constant 0 : i32
    return %c0_i32, %c0_i32_0 : i32, i32
  }
  func.func @transform_5(%arg0: i32) -> (i32, i32) {
    %c0_i32 = arith.constant 0 : i32
    %c0_i32_0 = arith.constant 0 : i32
    %c0_i32_1 = arith.constant 0 : i32
    return %c0_i32, %c0_i32_0 : i32, i32
  }
  func.func @transform_6(%arg0: i32) -> (i32, i32, i32) {
    %c0_i32 = arith.constant 0 : i32
    %c0_i32_0 = arith.constant 0 : i32
    %c0_i32_1 = arith.constant 0 : i32
    %c0_i32_2 = arith.constant 0 : i32
    return %c0_i32, %c0_i32_0, %c0_i32_1 : i32, i32, i32
  }
}

</mosaic_0001>

<llo_original>
// kernel: attention_forward.1
$region0: #{attention_forward.1}
  #allocation0 [shape = 'u32[]', space=smem, size = 0x4, offset = 0x4, fixed_abs, tag = 'smem constant byte address 0x4 - core index']
  #allocation1 [shape = 'u32[144,128]{1,0:T(1,128)}', space=vmem, size = 0x12000, scoped, tag = 'internal scratch']
  #allocation2 [shape = 'f32[128,144]{1,0:T(8,128)}', space=vmem, size = 0x20000, scoped, tag = 'scratch operand']
  %s0 = inlined_call_operand.vmem [shape: f32[2,10,10,16], index: 0, kind: input, shape index: {}]
  %s1 = inlined_call_operand.vmem [shape: bf16[144,96], index: 1, kind: input, shape index: {}]
  %s2 = inlined_call_operand.vmem [shape: f32[1,96], index: 2, kind: input, shape index: {}]
  %s3 = inlined_call_operand.vmem [shape: f32[32,32], index: 3, kind: input, shape index: {}]
  %s4 = inlined_call_operand.vmem [shape: bf16[32,16], index: 4, kind: input, shape index: {}]
  %s5 = inlined_call_operand.vmem [shape: f32[1,16], index: 5, kind: input, shape index: {}]
  %s6 = inlined_call_operand.vmem [shape: f32[2,16,64], index: 6, kind: output, shape index: {}]
  %s7 = sld [smem:[#allocation0]]
  $region34: #{attention_forward.1} parent=0
    _
  %s9 = ssub.s32 1, %s7
  %s10 = scalar_select 0, %s9, %s7
  // Predicated region
  $region2: #{attention_forward.1} parent=0 // pred_check
    _
  $region3: #{attention_forward.1} parent=0 // pred_check_branch
    %12 = sbr.rel (0) target = $region5
  $region4: #{attention_forward.1} parent=0 // pred_region
    _
  $region5: #{attention_forward.1} parent=0 // pred_fallthru
    _
  // Predicated region
  $region6: #{attention_forward.1} parent=0 // pred_check
    _
  $region7: #{attention_forward.1} parent=0 // pred_check_branch
    %14 = sbr.rel (0) target = $region9
  $region8: #{attention_forward.1} parent=0 // pred_region
    _
  $region9: #{attention_forward.1} parent=0 // pred_fallthru
    _
  // Predicated region
  $region10: #{attention_forward.1} parent=0 // pred_check
    _
  $region11: #{attention_forward.1} parent=0 // pred_check_branch
    %16 = sbr.rel (0) target = $region13
  $region12: #{attention_forward.1} parent=0 // pred_region
    _
  $region13: #{attention_forward.1} parent=0 // pred_fallthru
    _
  // Predicated region
  $region14: #{attention_forward.1} parent=0 // pred_check
    _
  $region15: #{attention_forward.1} parent=0 // pred_check_branch
    %18 = sbr.rel (0) target = $region17
  $region16: #{attention_forward.1} parent=0 // pred_region
    _
  $region17: #{attention_forward.1} parent=0 // pred_fallthru
    _
  // Predicated region
  $region18: #{attention_forward.1} parent=0 // pred_check
    _
  $region19: #{attention_forward.1} parent=0 // pred_check_branch
    %20 = sbr.rel (0) target = $region21
  $region20: #{attention_forward.1} parent=0 // pred_region
    _
  $region21: #{attention_forward.1} parent=0 // pred_fallthru
    _
  // Predicated region
  $region22: #{attention_forward.1} parent=0 // pred_check
    _
  $region23: #{attention_forward.1} parent=0 // pred_check_branch
    %22 = sbr.rel (0) target = $region25
  $region24: #{attention_forward.1} parent=0 // pred_region
    _
  $region25: #{attention_forward.1} parent=0 // pred_fallthru
    _
  %v24 = vld [vmem:[%s0] sm:$0xff]
  %v25 = vld [vmem:[%s0 + $0x8] sm:$0x3]
  %v26 = vld [vmem:[%s0 + $0x10] sm:$0xff]
  %v27 = vld [vmem:[%s0 + $0x18] sm:$0x3]
  %v28 = vld [vmem:[%s0 + $0x20] sm:$0xff]
  %v29 = vld [vmem:[%s0 + $0x28] sm:$0x3]
  %v30 = vld [vmem:[%s0 + $0x30] sm:$0xff]
  %v31 = vld [vmem:[%s0 + $0x38] sm:$0x3]
  %v32 = vld [vmem:[%s0 + $0x40] sm:$0xff]
  %v33 = vld [vmem:[%s0 + $0x48] sm:$0x3]
  %v34 = vld [vmem:[%s0 + $0x50] sm:$0xff]
  %v35 = vld [vmem:[%s0 + $0x58] sm:$0x3]
  %v36 = vld [vmem:[%s0 + $0x60] sm:$0xff]
  %v37 = vld [vmem:[%s0 + $0x68] sm:$0x3]
  %v38 = vld [vmem:[%s0 + $0x70] sm:$0xff]
  %v39 = vld [vmem:[%s0 + $0x78] sm:$0x3]
  %v40 = vld [vmem:[%s0 + $0x80] sm:$0xff]
  %v41 = vld [vmem:[%s0 + $0x88] sm:$0x3]
  %v42 = vld [vmem:[%s0 + $0x90] sm:$0xff]
  %v43 = vld [vmem:[%s0 + $0x98] sm:$0x3]
  %v44 = vld [vmem:[%s0 + $0xa0] sm:$0xff]
  %v45 = vld [vmem:[%s0 + $0xa8] sm:$0x3]
  %v46 = vld [vmem:[%s0 + $0xb0] sm:$0xff]
  %v47 = vld [vmem:[%s0 + $0xb8] sm:$0x3]
  %v48 = vld [vmem:[%s0 + $0xc0] sm:$0xff]
  %v49 = vld [vmem:[%s0 + $0xc8] sm:$0x3]
  %v50 = vld [vmem:[%s0 + $0xd0] sm:$0xff]
  %v51 = vld [vmem:[%s0 + $0xd8] sm:$0x3]
  %v52 = vld [vmem:[%s0 + $0xe0] sm:$0xff]
  %v53 = vld [vmem:[%s0 + $0xe8] sm:$0x3]
  %v54 = vld [vmem:[%s0 + $0xf0] sm:$0xff]
  %v55 = vld [vmem:[%s0 + $0xf8] sm:$0x3]
  %v56 = vld [vmem:[%s0 + $0x100] sm:$0xff]
  %v57 = vld [vmem:[%s0 + $0x108] sm:$0x3]
  %v58 = vld [vmem:[%s0 + $0x110] sm:$0xff]
  %v59 = vld [vmem:[%s0 + $0x118] sm:$0x3]
  %v60 = vld [vmem:[%s0 + $0x120] sm:$0xff]
  %v61 = vld [vmem:[%s0 + $0x128] sm:$0x3]
  %v62 = vld [vmem:[%s0 + $0x130] sm:$0xff]
  %v63 = vld [vmem:[%s0 + $0x138] sm:$0x3]
  %vm64 = vcmask 130048
  %65 = vst.msk [vmem:[#allocation2] sm:$0xff] %vm64, %v24
  %66 = vst.msk [vmem:[#allocation2 + $0x10] sm:$0xff] %vm64, %v26
  %67 = vst.msk [vmem:[#allocation2 + $0x20] sm:$0xff] %vm64, %v28
  %68 = vst.msk [vmem:[#allocation2 + $0x30] sm:$0xff] %vm64, %v30
  %69 = vst.msk [vmem:[#allocation2 + $0x40] sm:$0xff] %vm64, %v32
  %70 = vst.msk [vmem:[#allocation2 + $0x50] sm:$0xff] %vm64, %v34
  %71 = vst.msk [vmem:[#allocation2 + $0x60] sm:$0xff] %vm64, %v36
  %72 = vst.msk [vmem:[#allocation2 + $0x70] sm:$0xff] %vm64, %v38
  %73 = vst.msk [vmem:[#allocation2 + $0x80] sm:$0xff] %vm64, %v44
  %74 = vst.msk [vmem:[#allocation2 + $0x90] sm:$0xff] %vm64, %v46
  %75 = vst.msk [vmem:[#allocation2 + $0xa0] sm:$0xff] %vm64, %v48
  %76 = vst.msk [vmem:[#allocation2 + $0xb0] sm:$0xff] %vm64, %v50
  %77 = vst.msk [vmem:[#allocation2 + $0xc0] sm:$0xff] %vm64, %v52
  %78 = vst.msk [vmem:[#allocation2 + $0xd0] sm:$0xff] %vm64, %v54
  %79 = vst.msk [vmem:[#allocation2 + $0xe0] sm:$0xff] %vm64, %v56
  %80 = vst.msk [vmem:[#allocation2 + $0xf0] sm:$0xff] %vm64, %v58
  %vm113 = vcmask 1046528
  %v114 = vrot.slane %v24, 1
  %v115 = vrot.slane %v25, 1
  %v116 = vsel %vm113, %v114, %v115
  %v117 = vrot.slane %v26, 1
  %v118 = vrot.slane %v27, 1
  %v119 = vsel %vm113, %v117, %v118
  %v120 = vrot.slane %v28, 1
  %v121 = vrot.slane %v29, 1
  %v122 = vsel %vm113, %v120, %v121
  %v123 = vrot.slane %v30, 1
  %v124 = vrot.slane %v31, 1
  %v125 = vsel %vm113, %v123, %v124
  %v126 = vrot.slane %v32, 1
  %v127 = vrot.slane %v33, 1
  %v128 = vsel %vm113, %v126, %v127
  %v129 = vrot.slane %v34, 1
  %v130 = vrot.slane %v35, 1
  %v131 = vsel %vm113, %v129, %v130
  %v132 = vrot.slane %v36, 1
  %v133 = vrot.slane %v37, 1
  %v134 = vsel %vm113, %v132, %v133
  %v135 = vrot.slane %v38, 1
  %v136 = vrot.slane %v39, 1
  %v137 = vsel %vm113, %v135, %v136
  %v138 = vrot.slane %v44, 1
  %v139 = vrot.slane %v45, 1
  %v140 = vsel %vm113, %v138, %v139
  %v141 = vrot.slane %v46, 1
  %v142 = vrot.slane %v47, 1
  %v143 = vsel %vm113, %v141, %v142
  %v144 = vrot.slane %v48, 1
  %v145 = vrot.slane %v49, 1
  %v146 = vsel %vm113, %v144, %v145
  %v147 = vrot.slane %v50, 1
  %v148 = vrot.slane %v51, 1
  %v149 = vsel %vm113, %v147, %v148
  %v150 = vrot.slane %v52, 1
  %v151 = vrot.slane %v53, 1
  %v152 = vsel %vm113, %v150, %v151
  %v153 = vrot.slane %v54, 1
  %v154 = vrot.slane %v55, 1
  %v155 = vsel %vm113, %v153, %v154
  %v156 = vrot.slane %v56, 1
  %v157 = vrot.slane %v57, 1
  %v158 = vsel %vm113, %v156, %v157
  %v159 = vrot.slane %v58, 1
  %v160 = vrot.slane %v59, 1
  %v161 = vsel %vm113, %v159, %v160
  %162 = vrot.lane.b32.xlu0 %v116, 16
  %v163 = vpop.permute.xlu0 %162
  %164 = vrot.lane.b32.xlu0 %v119, 16
  %v165 = vpop.permute.xlu0 %164
  %166 = vrot.lane.b32.xlu0 %v122, 16
  %v167 = vpop.permute.xlu0 %166
  %168 = vrot.lane.b32.xlu0 %v125, 16
  %v169 = vpop.permute.xlu0 %168
  %170 = vrot.lane.b32.xlu0 %v128, 16
  %v171 = vpop.permute.xlu0 %170
  %172 = vrot.lane.b32.xlu0 %v131, 16
  %v173 = vpop.permute.xlu0 %172
  %174 = vrot.lane.b32.xlu0 %v134, 16
  %v175 = vpop.permute.xlu0 %174
  %176 = vrot.lane.b32.xlu0 %v137, 16
  %v177 = vpop.permute.xlu0 %176
  %178 = vrot.lane.b32.xlu0 %v140, 16
  %v179 = vpop.permute.xlu0 %178
  %180 = vrot.lane.b32.xlu0 %v143, 16
  %v181 = vpop.permute.xlu0 %180
  %182 = vrot.lane.b32.xlu0 %v146, 16
  %v183 = vpop.permute.xlu0 %182
  %184 = vrot.lane.b32.xlu0 %v149, 16
  %v185 = vpop.permute.xlu0 %184
  %186 = vrot.lane.b32.xlu0 %v152, 16
  %v187 = vpop.permute.xlu0 %186
  %188 = vrot.lane.b32.xlu0 %v155, 16
  %v189 = vpop.permute.xlu0 %188
  %190 = vrot.lane.b32.xlu0 %v158, 16
  %v191 = vpop.permute.xlu0 %190
  %192 = vrot.lane.b32.xlu0 %v161, 16
  %v193 = vpop.permute.xlu0 %192
  %vm210 = vcmask 261248
  %211 = vst.msk [vmem:[#allocation2] sm:$0xff] %vm210, %v163
  %212 = vst.msk [vmem:[#allocation2 + $0x10] sm:$0xff] %vm210, %v165
  %213 = vst.msk [vmem:[#allocation2 + $0x20] sm:$0xff] %vm210, %v167
  %214 = vst.msk [vmem:[#allocation2 + $0x30] sm:$0xff] %vm210, %v169
  %215 = vst.msk [vmem:[#allocation2 + $0x40] sm:$0xff] %vm210, %v171
  %216 = vst.msk [vmem:[#allocation2 + $0x50] sm:$0xff] %vm210, %v173
  %217 = vst.msk [vmem:[#allocation2 + $0x60] sm:$0xff] %vm210, %v175
  %218 = vst.msk [vmem:[#allocation2 + $0x70] sm:$0xff] %vm210, %v177
  %219 = vst.msk [vmem:[#allocation2 + $0x80] sm:$0xff] %vm210, %v179
  %220 = vst.msk [vmem:[#allocation2 + $0x90] sm:$0xff] %vm210, %v181
  %221 = vst.msk [vmem:[#allocation2 + $0xa0] sm:$0xff] %vm210, %v183
  %222 = vst.msk [vmem:[#allocation2 + $0xb0] sm:$0xff] %vm210, %v185
  %223 = vst.msk [vmem:[#allocation2 + $0xc0] sm:$0xff] %vm210, %v187
  %224 = vst.msk [vmem:[#allocation2 + $0xd0] sm:$0xff] %vm210, %v189
  %225 = vst.msk [vmem:[#allocation2 + $0xe0] sm:$0xff] %vm210, %v191
  %226 = vst.msk [vmem:[#allocation2 + $0xf0] sm:$0xff] %vm210, %v193
  %vm227 = vcmask 1045504
  %v228 = vrot.slane %v24, 2
  %v229 = vrot.slane %v25, 2
  %v230 = vsel %vm227, %v228, %v229
  %v231 = vrot.slane %v26, 2
  %v232 = vrot.slane %v27, 2
  %v233 = vsel %vm227, %v231, %v232
  %v234 = vrot.slane %v28, 2
  %v235 = vrot.slane %v29, 2
  %v236 = vsel %vm227, %v234, %v235
  %v237 = vrot.slane %v30, 2
  %v238 = vrot.slane %v31, 2
  %v239 = vsel %vm227, %v237, %v238
  %v240 = vrot.slane %v32, 2
  %v241 = vrot.slane %v33, 2
  %v242 = vsel %vm227, %v240, %v241
  %v243 = vrot.slane %v34, 2
  %v244 = vrot.slane %v35, 2
  %v245 = vsel %vm227, %v243, %v244
  %v246 = vrot.slane %v36, 2
  %v247 = vrot.slane %v37, 2
  %v248 = vsel %vm227, %v246, %v247
  %v249 = vrot.slane %v38, 2
  %v250 = vrot.slane %v39, 2
  %v251 = vsel %vm227, %v249, %v250
  %v252 = vrot.slane %v44, 2
  %v253 = vrot.slane %v45, 2
  %v254 = vsel %vm227, %v252, %v253
  %v255 = vrot.slane %v46, 2
  %v256 = vrot.slane %v47, 2
  %v257 = vsel %vm227, %v255, %v256
  %v258 = vrot.slane %v48, 2
  %v259 = vrot.slane %v49, 2
  %v260 = vsel %vm227, %v258, %v259
  %v261 = vrot.slane %v50, 2
  %v262 = vrot.slane %v51, 2
  %v263 = vsel %vm227, %v261, %v262
  %v264 = vrot.slane %v52, 2
  %v265 = vrot.slane %v53, 2
  %v266 = vsel %vm227, %v264, %v265
  %v267 = vrot.slane %v54, 2
  %v268 = vrot.slane %v55, 2
  %v269 = vsel %vm227, %v267, %v268
  %v270 = vrot.slane %v56, 2
  %v271 = vrot.slane %v57, 2
  %v272 = vsel %vm227, %v270, %v271
  %v273 = vrot.slane %v58, 2
  %v274 = vrot.slane %v59, 2
  %v275 = vsel %vm227, %v273, %v274
  %276 = vrot.lane.b32.xlu0 %v230, 32
  %v277 = vpop.permute.xlu0 %276
  %278 = vrot.lane.b32.xlu0 %v233, 32
  %v279 = vpop.permute.xlu0 %278
  %280 = vrot.lane.b32.xlu0 %v236, 32
  %v281 = vpop.permute.xlu0 %280
  %282 = vrot.lane.b32.xlu0 %v239, 32
  %v283 = vpop.permute.xlu0 %282
  %284 = vrot.lane.b32.xlu0 %v242, 32
  %v285 = vpop.permute.xlu0 %284
  %286 = vrot.lane.b32.xlu0 %v245, 32
  %v287 = vpop.permute.xlu0 %286
  %288 = vrot.lane.b32.xlu0 %v248, 32
  %v289 = vpop.permute.xlu0 %288
  %290 = vrot.lane.b32.xlu0 %v251, 32
  %v291 = vpop.permute.xlu0 %290
  %292 = vrot.lane.b32.xlu0 %v254, 32
  %v293 = vpop.permute.xlu0 %292
  %294 = vrot.lane.b32.xlu0 %v257, 32
  %v295 = vpop.permute.xlu0 %294
  %296 = vrot.lane.b32.xlu0 %v260, 32
  %v297 = vpop.permute.xlu0 %296
  %298 = vrot.lane.b32.xlu0 %v263, 32
  %v299 = vpop.permute.xlu0 %298
  %300 = vrot.lane.b32.xlu0 %v266, 32
  %v301 = vpop.permute.xlu0 %300
  %302 = vrot.lane.b32.xlu0 %v269, 32
  %v303 = vpop.permute.xlu0 %302
  %304 = vrot.lane.b32.xlu0 %v272, 32
  %v305 = vpop.permute.xlu0 %304
  %306 = vrot.lane.b32.xlu0 %v275, 32
  %v307 = vpop.permute.xlu0 %306
  %vm324 = vcmask 392448
  %325 = vst.msk [vmem:[#allocation2] sm:$0xff] %vm324, %v277
  %326 = vst.msk [vmem:[#allocation2 + $0x10] sm:$0xff] %vm324, %v279
  %327 = vst.msk [vmem:[#allocation2 + $0x20] sm:$0xff] %vm324, %v281
  %328 = vst.msk [vmem:[#allocation2 + $0x30] sm:$0xff] %vm324, %v283
  %329 = vst.msk [vmem:[#allocation2 + $0x40] sm:$0xff] %vm324, %v285
  %330 = vst.msk [vmem:[#allocation2 + $0x50] sm:$0xff] %vm324, %v287
  %331 = vst.msk [vmem:[#allocation2 + $0x60] sm:$0xff] %vm324, %v289
  %332 = vst.msk [vmem:[#allocation2 + $0x70] sm:$0xff] %vm324, %v291
  %333 = vst.msk [vmem:[#allocation2 + $0x80] sm:$0xff] %vm324, %v293
  %334 = vst.msk [vmem:[#allocation2 + $0x90] sm:$0xff] %vm324, %v295
  %335 = vst.msk [vmem:[#allocation2 + $0xa0] sm:$0xff] %vm324, %v297
  %336 = vst.msk [vmem:[#allocation2 + $0xb0] sm:$0xff] %vm324, %v299
  %337 = vst.msk [vmem:[#allocation2 + $0xc0] sm:$0xff] %vm324, %v301
  %338 = vst.msk [vmem:[#allocation2 + $0xd0] sm:$0xff] %vm324, %v303
  %339 = vst.msk [vmem:[#allocation2 + $0xe0] sm:$0xff] %vm324, %v305
  %340 = vst.msk [vmem:[#allocation2 + $0xf0] sm:$0xff] %vm324, %v307
  %343 = vrot.lane.b32.xlu0 %v26, 48
  %v344 = vpop.permute.xlu0 %343
  %345 = vrot.lane.b32.xlu0 %v28, 48
  %v346 = vpop.permute.xlu0 %345
  %347 = vrot.lane.b32.xlu0 %v30, 48
  %v348 = vpop.permute.xlu0 %347
  %349 = vrot.lane.b32.xlu0 %v32, 48
  %v350 = vpop.permute.xlu0 %349
  %351 = vrot.lane.b32.xlu0 %v34, 48
  %v352 = vpop.permute.xlu0 %351
  %353 = vrot.lane.b32.xlu0 %v36, 48
  %v354 = vpop.permute.xlu0 %353
  %355 = vrot.lane.b32.xlu0 %v38, 48
  %v356 = vpop.permute.xlu0 %355
  %357 = vrot.lane.b32.xlu0 %v40, 48
  %v358 = vpop.permute.xlu0 %357
  %359 = vrot.lane.b32.xlu0 %v46, 48
  %v360 = vpop.permute.xlu0 %359
  %361 = vrot.lane.b32.xlu0 %v48, 48
  %v362 = vpop.permute.xlu0 %361
  %363 = vrot.lane.b32.xlu0 %v50, 48
  %v364 = vpop.permute.xlu0 %363
  %365 = vrot.lane.b32.xlu0 %v52, 48
  %v366 = vpop.permute.xlu0 %365
  %367 = vrot.lane.b32.xlu0 %v54, 48
  %v368 = vpop.permute.xlu0 %367
  %369 = vrot.lane.b32.xlu0 %v56, 48
  %v370 = vpop.permute.xlu0 %369
  %371 = vrot.lane.b32.xlu0 %v58, 48
  %v372 = vpop.permute.xlu0 %371
  %373 = vrot.lane.b32.xlu0 %v60, 48
  %v374 = vpop.permute.xlu0 %373
  %vm391 = vcmask 523648
  %392 = vst.msk [vmem:[#allocation2] sm:$0xff] %vm391, %v344
  %393 = vst.msk [vmem:[#allocation2 + $0x10] sm:$0xff] %vm391, %v346
  %394 = vst.msk [vmem:[#allocation2 + $0x20] sm:$0xff] %vm391, %v348
  %395 = vst.msk [vmem:[#allocation2 + $0x30] sm:$0xff] %vm391, %v350
  %396 = vst.msk [vmem:[#allocation2 + $0x40] sm:$0xff] %vm391, %v352
  %397 = vst.msk [vmem:[#allocation2 + $0x50] sm:$0xff] %vm391, %v354
  %398 = vst.msk [vmem:[#allocation2 + $0x60] sm:$0xff] %vm391, %v356
  %399 = vst.msk [vmem:[#allocation2 + $0x70] sm:$0xff] %vm391, %v358
  %400 = vst.msk [vmem:[#allocation2 + $0x80] sm:$0xff] %vm391, %v360
  %401 = vst.msk [vmem:[#allocation2 + $0x90] sm:$0xff] %vm391, %v362
  %402 = vst.msk [vmem:[#allocation2 + $0xa0] sm:$0xff] %vm391, %v364
  %403 = vst.msk [vmem:[#allocation2 + $0xb0] sm:$0xff] %vm391, %v366
  %404 = vst.msk [vmem:[#allocation2 + $0xc0] sm:$0xff] %vm391, %v368
  %405 = vst.msk [vmem:[#allocation2 + $0xd0] sm:$0xff] %vm391, %v370
  %406 = vst.msk [vmem:[#allocation2 + $0xe0] sm:$0xff] %vm391, %v372
  %407 = vst.msk [vmem:[#allocation2 + $0xf0] sm:$0xff] %vm391, %v374
  %v410 = vrot.slane %v40, 1
  %v411 = vrot.slane %v41, 1
  %v412 = vsel %vm113, %v410, %v411
  %v413 = vrot.slane %v60, 1
  %v414 = vrot.slane %v61, 1
  %v415 = vsel %vm113, %v413, %v414
  %416 = vrot.lane.b32.xlu0 %v119, 64
  %v417 = vpop.permute.xlu0 %416
  %418 = vrot.lane.b32.xlu0 %v122, 64
  %v419 = vpop.permute.xlu0 %418
  %420 = vrot.lane.b32.xlu0 %v125, 64
  %v421 = vpop.permute.xlu0 %420
  %422 = vrot.lane.b32.xlu0 %v128, 64
  %v423 = vpop.permute.xlu0 %422
  %424 = vrot.lane.b32.xlu0 %v131, 64
  %v425 = vpop.permute.xlu0 %424
  %426 = vrot.lane.b32.xlu0 %v134, 64
  %v427 = vpop.permute.xlu0 %426
  %428 = vrot.lane.b32.xlu0 %v137, 64
  %v429 = vpop.permute.xlu0 %428
  %430 = vrot.lane.b32.xlu0 %v412, 64
  %v431 = vpop.permute.xlu0 %430
  %432 = vrot.lane.b32.xlu0 %v143, 64
  %v433 = vpop.permute.xlu0 %432
  %434 = vrot.lane.b32.xlu0 %v146, 64
  %v435 = vpop.permute.xlu0 %434
  %436 = vrot.lane.b32.xlu0 %v149, 64
  %v437 = vpop.permute.xlu0 %436
  %438 = vrot.lane.b32.xlu0 %v152, 64
  %v439 = vpop.permute.xlu0 %438
  %440 = vrot.lane.b32.xlu0 %v155, 64
  %v441 = vpop.permute.xlu0 %440
  %442 = vrot.lane.b32.xlu0 %v158, 64
  %v443 = vpop.permute.xlu0 %442
  %444 = vrot.lane.b32.xlu0 %v161, 64
  %v445 = vpop.permute.xlu0 %444
  %446 = vrot.lane.b32.xlu0 %v415, 64
  %v447 = vpop.permute.xlu0 %446
  %vm464 = vcmask 654848
  %465 = vst.msk [vmem:[#allocation2] sm:$0xff] %vm464, %v417
  %466 = vst.msk [vmem:[#allocation2 + $0x10] sm:$0xff] %vm464, %v419
  %467 = vst.msk [vmem:[#allocation2 + $0x20] sm:$0xff] %vm464, %v421
  %468 = vst.msk [vmem:[#allocation2 + $0x30] sm:$0xff] %vm464, %v423
  %469 = vst.msk [vmem:[#allocation2 + $0x40] sm:$0xff] %vm464, %v425
  %470 = vst.msk [vmem:[#allocation2 + $0x50] sm:$0xff] %vm464, %v427
  %471 = vst.msk [vmem:[#allocation2 + $0x60] sm:$0xff] %vm464, %v429
  %472 = vst.msk [vmem:[#allocation2 + $0x70] sm:$0xff] %vm464, %v431
  %473 = vst.msk [vmem:[#allocation2 + $0x80] sm:$0xff] %vm464, %v433
  %474 = vst.msk [vmem:[#allocation2 + $0x90] sm:$0xff] %vm464, %v435
  %475 = vst.msk [vmem:[#allocation2 + $0xa0] sm:$0xff] %vm464, %v437
  %476 = vst.msk [vmem:[#allocation2 + $0xb0] sm:$0xff] %vm464, %v439
  %477 = vst.msk [vmem:[#allocation2 + $0xc0] sm:$0xff] %vm464, %v441
  %478 = vst.msk [vmem:[#allocation2 + $0xd0] sm:$0xff] %vm464, %v443
  %479 = vst.msk [vmem:[#allocation2 + $0xe0] sm:$0xff] %vm464, %v445
  %480 = vst.msk [vmem:[#allocation2 + $0xf0] sm:$0xff] %vm464, %v447
  %v481 = vrot.slane %v40, 2
  %v482 = vrot.slane %v41, 2
  %v483 = vsel %vm227, %v481, %v482
  %v484 = vrot.slane %v60, 2
  %v485 = vrot.slane %v61, 2
  %v486 = vsel %vm227, %v484, %v485
  %487 = vrot.lane.b32.xlu0 %v233, 80
  %v488 = vpop.permute.xlu0 %487
  %489 = vrot.lane.b32.xlu0 %v236, 80
  %v490 = vpop.permute.xlu0 %489
  %491 = vrot.lane.b32.xlu0 %v239, 80
  %v492 = vpop.permute.xlu0 %491
  %493 = vrot.lane.b32.xlu0 %v242, 80
  %v494 = vpop.permute.xlu0 %493
  %495 = vrot.lane.b32.xlu0 %v245, 80
  %v496 = vpop.permute.xlu0 %495
  %497 = vrot.lane.b32.xlu0 %v248, 80
  %v498 = vpop.permute.xlu0 %497
  %499 = vrot.lane.b32.xlu0 %v251, 80
  %v500 = vpop.permute.xlu0 %499
  %501 = vrot.lane.b32.xlu0 %v483, 80
  %v502 = vpop.permute.xlu0 %501
  %503 = vrot.lane.b32.xlu0 %v257, 80
  %v504 = vpop.permute.xlu0 %503
  %505 = vrot.lane.b32.xlu0 %v260, 80
  %v506 = vpop.permute.xlu0 %505
  %507 = vrot.lane.b32.xlu0 %v263, 80
  %v508 = vpop.permute.xlu0 %507
  %509 = vrot.lane.b32.xlu0 %v266, 80
  %v510 = vpop.permute.xlu0 %509
  %511 = vrot.lane.b32.xlu0 %v269, 80
  %v512 = vpop.permute.xlu0 %511
  %513 = vrot.lane.b32.xlu0 %v272, 80
  %v514 = vpop.permute.xlu0 %513
  %515 = vrot.lane.b32.xlu0 %v275, 80
  %v516 = vpop.permute.xlu0 %515
  %517 = vrot.lane.b32.xlu0 %v486, 80
  %v518 = vpop.permute.xlu0 %517
  %vm535 = vcmask 786048
  %536 = vst.msk [vmem:[#allocation2] sm:$0xff] %vm535, %v488
  %537 = vst.msk [vmem:[#allocation2 + $0x10] sm:$0xff] %vm535, %v490
  %538 = vst.msk [vmem:[#allocation2 + $0x20] sm:$0xff] %vm535, %v492
  %539 = vst.msk [vmem:[#allocation2 + $0x30] sm:$0xff] %vm535, %v494
  %540 = vst.msk [vmem:[#allocation2 + $0x40] sm:$0xff] %vm535, %v496
  %541 = vst.msk [vmem:[#allocation2 + $0x50] sm:$0xff] %vm535, %v498
  %542 = vst.msk [vmem:[#allocation2 + $0x60] sm:$0xff] %vm535, %v500
  %543 = vst.msk [vmem:[#allocation2 + $0x70] sm:$0xff] %vm535, %v502
  %544 = vst.msk [vmem:[#allocation2 + $0x80] sm:$0xff] %vm535, %v504
  %545 = vst.msk [vmem:[#allocation2 + $0x90] sm:$0xff] %vm535, %v506
  %546 = vst.msk [vmem:[#allocation2 + $0xa0] sm:$0xff] %vm535, %v508
  %547 = vst.msk [vmem:[#allocation2 + $0xb0] sm:$0xff] %vm535, %v510
  %548 = vst.msk [vmem:[#allocation2 + $0xc0] sm:$0xff] %vm535, %v512
  %549 = vst.msk [vmem:[#allocation2 + $0xd0] sm:$0xff] %vm535, %v514
  %550 = vst.msk [vmem:[#allocation2 + $0xe0] sm:$0xff] %vm535, %v516
  %551 = vst.msk [vmem:[#allocation2 + $0xf0] sm:$0xff] %vm535, %v518
  %554 = vrot.lane.b32.xlu0 %v28, 96
  %v555 = vpop.permute.xlu0 %554
  %556 = vrot.lane.b32.xlu0 %v30, 96
  %v557 = vpop.permute.xlu0 %556
  %558 = vrot.lane.b32.xlu0 %v32, 96
  %v559 = vpop.permute.xlu0 %558
  %560 = vrot.lane.b32.xlu0 %v34, 96
  %v561 = vpop.permute.xlu0 %560
  %562 = vrot.lane.b32.xlu0 %v36, 96
  %v563 = vpop.permute.xlu0 %562
  %564 = vrot.lane.b32.xlu0 %v38, 96
  %v565 = vpop.permute.xlu0 %564
  %566 = vrot.lane.b32.xlu0 %v40, 96
  %v567 = vpop.permute.xlu0 %566
  %568 = vrot.lane.b32.xlu0 %v42, 96
  %v569 = vpop.permute.xlu0 %568
  %570 = vrot.lane.b32.xlu0 %v48, 96
  %v571 = vpop.permute.xlu0 %570
  %572 = vrot.lane.b32.xlu0 %v50, 96
  %v573 = vpop.permute.xlu0 %572
  %574 = vrot.lane.b32.xlu0 %v52, 96
  %v575 = vpop.permute.xlu0 %574
  %576 = vrot.lane.b32.xlu0 %v54, 96
  %v577 = vpop.permute.xlu0 %576
  %578 = vrot.lane.b32.xlu0 %v56, 96
  %v579 = vpop.permute.xlu0 %578
  %580 = vrot.lane.b32.xlu0 %v58, 96
  %v581 = vpop.permute.xlu0 %580
  %582 = vrot.lane.b32.xlu0 %v60, 96
  %v583 = vpop.permute.xlu0 %582
  %584 = vrot.lane.b32.xlu0 %v62, 96
  %v585 = vpop.permute.xlu0 %584
  %vm602 = vcmask 917248
  %603 = vst.msk [vmem:[#allocation2] sm:$0xff] %vm602, %v555
  %604 = vst.msk [vmem:[#allocation2 + $0x10] sm:$0xff] %vm602, %v557
  %605 = vst.msk [vmem:[#allocation2 + $0x20] sm:$0xff] %vm602, %v559
  %606 = vst.msk [vmem:[#allocation2 + $0x30] sm:$0xff] %vm602, %v561
  %607 = vst.msk [vmem:[#allocation2 + $0x40] sm:$0xff] %vm602, %v563
  %608 = vst.msk [vmem:[#allocation2 + $0x50] sm:$0xff] %vm602, %v565
  %609 = vst.msk [vmem:[#allocation2 + $0x60] sm:$0xff] %vm602, %v567
  %610 = vst.msk [vmem:[#allocation2 + $0x70] sm:$0xff] %vm602, %v569
  %611 = vst.msk [vmem:[#allocation2 + $0x80] sm:$0xff] %vm602, %v571
  %612 = vst.msk [vmem:[#allocation2 + $0x90] sm:$0xff] %vm602, %v573
  %613 = vst.msk [vmem:[#allocation2 + $0xa0] sm:$0xff] %vm602, %v575
  %614 = vst.msk [vmem:[#allocation2 + $0xb0] sm:$0xff] %vm602, %v577
  %615 = vst.msk [vmem:[#allocation2 + $0xc0] sm:$0xff] %vm602, %v579
  %616 = vst.msk [vmem:[#allocation2 + $0xd0] sm:$0xff] %vm602, %v581
  %617 = vst.msk [vmem:[#allocation2 + $0xe0] sm:$0xff] %vm602, %v583
  %618 = vst.msk [vmem:[#allocation2 + $0xf0] sm:$0xff] %vm602, %v585
  %v621 = vrot.slane %v42, 1
  %v622 = vrot.slane %v43, 1
  %v623 = vsel %vm113, %v621, %v622
  %v624 = vrot.slane %v62, 1
  %v625 = vrot.slane %v63, 1
  %v626 = vsel %vm113, %v624, %v625
  %627 = vrot.lane.b32.xlu0 %v122, 112
  %v628 = vpop.permute.xlu0 %627
  %629 = vrot.lane.b32.xlu0 %v125, 112
  %v630 = vpop.permute.xlu0 %629
  %631 = vrot.lane.b32.xlu0 %v128, 112
  %v632 = vpop.permute.xlu0 %631
  %633 = vrot.lane.b32.xlu0 %v131, 112
  %v634 = vpop.permute.xlu0 %633
  %635 = vrot.lane.b32.xlu0 %v134, 112
  %v636 = vpop.permute.xlu0 %635
  %637 = vrot.lane.b32.xlu0 %v137, 112
  %v638 = vpop.permute.xlu0 %637
  %639 = vrot.lane.b32.xlu0 %v412, 112
  %v640 = vpop.permute.xlu0 %639
  %641 = vrot.lane.b32.xlu0 %v623, 112
  %v642 = vpop.permute.xlu0 %641
  %643 = vrot.lane.b32.xlu0 %v146, 112
  %v644 = vpop.permute.xlu0 %643
  %645 = vrot.lane.b32.xlu0 %v149, 112
  %v646 = vpop.permute.xlu0 %645
  %647 = vrot.lane.b32.xlu0 %v152, 112
  %v648 = vpop.permute.xlu0 %647
  %649 = vrot.lane.b32.xlu0 %v155, 112
  %v650 = vpop.permute.xlu0 %649
  %651 = vrot.lane.b32.xlu0 %v158, 112
  %v652 = vpop.permute.xlu0 %651
  %653 = vrot.lane.b32.xlu0 %v161, 112
  %v654 = vpop.permute.xlu0 %653
  %655 = vrot.lane.b32.xlu0 %v415, 112
  %v656 = vpop.permute.xlu0 %655
  %657 = vrot.lane.b32.xlu0 %v626, 112
  %v658 = vpop.permute.xlu0 %657
  %vm675 = vcmask 1048448
  %676 = vst.msk [vmem:[#allocation2] sm:$0xff] %vm675, %v628
  %677 = vst.msk [vmem:[#allocation2 + $0x10] sm:$0xff] %vm675, %v630
  %678 = vst.msk [vmem:[#allocation2 + $0x20] sm:$0xff] %vm675, %v632
  %679 = vst.msk [vmem:[#allocation2 + $0x30] sm:$0xff] %vm675, %v634
  %680 = vst.msk [vmem:[#allocation2 + $0x40] sm:$0xff] %vm675, %v636
  %681 = vst.msk [vmem:[#allocation2 + $0x50] sm:$0xff] %vm675, %v638
  %682 = vst.msk [vmem:[#allocation2 + $0x60] sm:$0xff] %vm675, %v640
  %683 = vst.msk [vmem:[#allocation2 + $0x70] sm:$0xff] %vm675, %v642
  %684 = vst.msk [vmem:[#allocation2 + $0x80] sm:$0xff] %vm675, %v644
  %685 = vst.msk [vmem:[#allocation2 + $0x90] sm:$0xff] %vm675, %v646
  %686 = vst.msk [vmem:[#allocation2 + $0xa0] sm:$0xff] %vm675, %v648
  %687 = vst.msk [vmem:[#allocation2 + $0xb0] sm:$0xff] %vm675, %v650
  %688 = vst.msk [vmem:[#allocation2 + $0xc0] sm:$0xff] %vm675, %v652
  %689 = vst.msk [vmem:[#allocation2 + $0xd0] sm:$0xff] %vm675, %v654
  %690 = vst.msk [vmem:[#allocation2 + $0xe0] sm:$0xff] %vm675, %v656
  %691 = vst.msk [vmem:[#allocation2 + $0xf0] sm:$0xff] %vm675, %v658
  %v692 = vrot.slane %v42, 2
  %v693 = vrot.slane %v43, 2
  %v694 = vsel %vm227, %v692, %v693
  %v695 = vrot.slane %v62, 2
  %v696 = vrot.slane %v63, 2
  %v697 = vsel %vm227, %v695, %v696
  %714 = vst.msk [vmem:[#allocation2 + $0x8] sm:$0xff] %vm64, %v236
  %715 = vst.msk [vmem:[#allocation2 + $0x18] sm:$0xff] %vm64, %v239
  %716 = vst.msk [vmem:[#allocation2 + $0x28] sm:$0xff] %vm64, %v242
  %717 = vst.msk [vmem:[#allocation2 + $0x38] sm:$0xff] %vm64, %v245
  %718 = vst.msk [vmem:[#allocation2 + $0x48] sm:$0xff] %vm64, %v248
  %719 = vst.msk [vmem:[#allocation2 + $0x58] sm:$0xff] %vm64, %v251
  %720 = vst.msk [vmem:[#allocation2 + $0x68] sm:$0xff] %vm64, %v483
  %721 = vst.msk [vmem:[#allocation2 + $0x78] sm:$0xff] %vm64, %v694
  %722 = vst.msk [vmem:[#allocation2 + $0x88] sm:$0xff] %vm64, %v260
  %723 = vst.msk [vmem:[#allocation2 + $0x98] sm:$0xff] %vm64, %v263
  %724 = vst.msk [vmem:[#allocation2 + $0xa8] sm:$0xff] %vm64, %v266
  %725 = vst.msk [vmem:[#allocation2 + $0xb8] sm:$0xff] %vm64, %v269
  %726 = vst.msk [vmem:[#allocation2 + $0xc8] sm:$0xff] %vm64, %v272
  %727 = vst.msk [vmem:[#allocation2 + $0xd8] sm:$0xff] %vm64, %v275
  %728 = vst.msk [vmem:[#allocation2 + $0xe8] sm:$0xff] %vm64, %v486
  %729 = vst.msk [vmem:[#allocation2 + $0xf8] sm:$0xff] %vm64, %v697
  %v730 = vld [vmem:[#allocation2] sm:$0xff]
  %v731 = vld [vmem:[#allocation2 + $0x8] sm:$0xff]
  %v732 = vld [vmem:[#allocation2 + $0x10] sm:$0xff]
  %v733 = vld [vmem:[#allocation2 + $0x18] sm:$0xff]
  %v734 = vld [vmem:[#allocation2 + $0x20] sm:$0xff]
  %v735 = vld [vmem:[#allocation2 + $0x28] sm:$0xff]
  %v736 = vld [vmem:[#allocation2 + $0x30] sm:$0xff]
  %v737 = vld [vmem:[#allocation2 + $0x38] sm:$0xff]
  %v738 = vld [vmem:[#allocation2 + $0x40] sm:$0xff]
  %v739 = vld [vmem:[#allocation2 + $0x48] sm:$0xff]
  %v740 = vld [vmem:[#allocation2 + $0x50] sm:$0xff]
  %v741 = vld [vmem:[#allocation2 + $0x58] sm:$0xff]
  %v742 = vld [vmem:[#allocation2 + $0x60] sm:$0xff]
  %v743 = vld [vmem:[#allocation2 + $0x68] sm:$0xff]
  %v744 = vld [vmem:[#allocation2 + $0x70] sm:$0xff]
  %v745 = vld [vmem:[#allocation2 + $0x78] sm:$0xff]
  %v746 = vld [vmem:[#allocation2 + $0x80] sm:$0xff]
  %v747 = vld [vmem:[#allocation2 + $0x88] sm:$0xff]
  %v748 = vld [vmem:[#allocation2 + $0x90] sm:$0xff]
  %v749 = vld [vmem:[#allocation2 + $0x98] sm:$0xff]
  %v750 = vld [vmem:[#allocation2 + $0xa0] sm:$0xff]
  %v751 = vld [vmem:[#allocation2 + $0xa8] sm:$0xff]
  %v752 = vld [vmem:[#allocation2 + $0xb0] sm:$0xff]
  %v753 = vld [vmem:[#allocation2 + $0xb8] sm:$0xff]
  %v754 = vld [vmem:[#allocation2 + $0xc0] sm:$0xff]
  %v755 = vld [vmem:[#allocation2 + $0xc8] sm:$0xff]
  %v756 = vld [vmem:[#allocation2 + $0xd0] sm:$0xff]
  %v757 = vld [vmem:[#allocation2 + $0xd8] sm:$0xff]
  %v758 = vld [vmem:[#allocation2 + $0xe0] sm:$0xff]
  %v759 = vld [vmem:[#allocation2 + $0xe8] sm:$0xff]
  %v760 = vld [vmem:[#allocation2 + $0xf0] sm:$0xff]
  %v761 = vld [vmem:[#allocation2 + $0xf8] sm:$0xff]
  %v762 = vpack.c.bf16 %v732, %v730
  %v763 = vpack.c.bf16 %v733, %v731
  %v764 = vpack.c.bf16 %v736, %v734
  %v765 = vpack.c.bf16 %v737, %v735
  %v766 = vpack.c.bf16 %v740, %v738
  %v767 = vpack.c.bf16 %v741, %v739
  %v768 = vpack.c.bf16 %v744, %v742
  %v769 = vpack.c.bf16 %v745, %v743
  %v770 = vpack.c.bf16 %v748, %v746
  %v771 = vpack.c.bf16 %v749, %v747
  %v772 = vpack.c.bf16 %v752, %v750
  %v773 = vpack.c.bf16 %v753, %v751
  %v774 = vpack.c.bf16 %v756, %v754
  %v775 = vpack.c.bf16 %v757, %v755
  %v776 = vpack.c.bf16 %v760, %v758
  %v777 = vpack.c.bf16 %v761, %v759
  %v778 = vld [vmem:[%s1] sm:$0xf]
  %v779 = vld [vmem:[%s1 + $0x4] sm:$0xf]
  %v780 = vld [vmem:[%s1 + $0x8] sm:$0xf]
  %v781 = vld [vmem:[%s1 + $0xc] sm:$0xf]
  %v782 = vld [vmem:[%s1 + $0x10] sm:$0xf]
  %v783 = vld [vmem:[%s1 + $0x14] sm:$0xf]
  %v784 = vld [vmem:[%s1 + $0x18] sm:$0xf]
  %v785 = vld [vmem:[%s1 + $0x1c] sm:$0xf]
  %v786 = vld [vmem:[%s1 + $0x20] sm:$0xf]
  %v787 = vld [vmem:[%s1 + $0x24] sm:$0xf]
  %v788 = vld [vmem:[%s1 + $0x28] sm:$0xf]
  %v789 = vld [vmem:[%s1 + $0x2c] sm:$0xf]
  %v790 = vld [vmem:[%s1 + $0x30] sm:$0xf]
  %v791 = vld [vmem:[%s1 + $0x34] sm:$0xf]
  %v792 = vld [vmem:[%s1 + $0x38] sm:$0xf]
  %v793 = vld [vmem:[%s1 + $0x3c] sm:$0xf]
  %v794 = vld [vmem:[%s1 + $0x40] sm:$0xf]
  %v795 = vld [vmem:[%s1 + $0x44] sm:$0xf]
  %v796 = vld [vmem:[%s2] sm:$0x1]
  %v798 = vlaneseq
  %v799 = vshrl.u32 %v798, 7
  %v800 = vsub.s32 0, %v799
  %v801 = vrot.slane %v796, %v800
  %v821 = vunpack.c.l.b16 %v778
  %v822 = vunpack.c.l.b16 %v779
  %v823 = vunpack.c.l.b16 %v780
  %v824 = vunpack.c.l.b16 %v781
  %v825 = vunpack.c.l.b16 %v782
  %v826 = vunpack.c.l.b16 %v783
  %v827 = vunpack.c.l.b16 %v784
  %v828 = vunpack.c.l.b16 %v785
  %v829 = vunpack.c.l.b16 %v786
  %v830 = vunpack.c.l.b16 %v787
  %v831 = vunpack.c.l.b16 %v788
  %v832 = vunpack.c.l.b16 %v789
  %v833 = vunpack.c.l.b16 %v790
  %v834 = vunpack.c.l.b16 %v791
  %v835 = vunpack.c.l.b16 %v792
  %v836 = vunpack.c.l.b16 %v793
  %v837 = vunpack.c.l.b16 %v794
  %v838 = vunpack.c.l.b16 %v795
  %v839 = vpack.c.b16 %v822, %v821
  %v840 = vpack.c.b16 %v824, %v823
  %v841 = vpack.c.b16 %v826, %v825
  %v842 = vpack.c.b16 %v828, %v827
  %v843 = vpack.c.b16 %v830, %v829
  %v844 = vpack.c.b16 %v832, %v831
  %v845 = vpack.c.b16 %v834, %v833
  %v846 = vpack.c.b16 %v836, %v835
  %v847 = vpack.c.b16 %v838, %v837
  %v858 = vsel %vm64, %v763, 0
  %v861 = vsel %vm64, %v765, 0
  %v864 = vsel %vm64, %v767, 0
  %v867 = vsel %vm64, %v769, 0
  %v870 = vsel %vm64, %v771, 0
  %v873 = vsel %vm64, %v773, 0
  %v876 = vsel %vm64, %v775, 0
  %v879 = vsel %vm64, %v777, 0
  %881 = vmatprep.subr.bf16.mxu0 0
  %882 = vmatpush1.bf16.msra.mxu0 %v839
  %883 = vmatprep.subr.bf16.mxu0 0
  %884 = vmatpush1.bf16.msra.mxu0 %v840
  %885 = vmatprep.subr.bf16.mxu0 0
  %886 = vmatpush1.bf16.msra.mxu0 %v841
  %887 = vmatprep.subr.bf16.mxu0 0
  %888 = vmatpush1.bf16.msra.mxu0 %v842
  %889 = vmatprep.subr.bf16.mxu0 0
  %890 = vmatpush1.bf16.msra.mxu0 %v843
  %891 = vmatprep.subr.bf16.mxu0 0
  %892 = vmatpush1.bf16.msra.mxu0 %v844
  %893 = vmatprep.subr.bf16.mxu0 0
  %894 = vmatpush1.bf16.msra.mxu0 %v845
  %895 = vmatprep.subr.bf16.mxu0 0
  %896 = vmatpush1.bf16.msra.mxu0 %v846
  %897 = vmatprep.subr.bf16.mxu0 0
  %898 = vmatpush1.bf16.msra.mxu0 %v847
  %899 = vmatprep.subr.bf16.mxu0 0
  %900 = vmatpush1.bf16.msra.mxu0 0
  %901 = vmatprep.subr.bf16.mxu0 0
  %902 = vmatpush1.bf16.msra.mxu0 0
  %903 = vmatprep.subr.bf16.mxu0 0
  %904 = vmatpush1.bf16.msra.mxu0 0
  %905 = vmatprep.subr.bf16.mxu0 0
  %906 = vmatpush1.bf16.msra.mxu0 0
  %907 = vmatprep.subr.bf16.mxu0 0
  %908 = vmatpush1.bf16.msra.mxu0 0
  %909 = vmatprep.subr.bf16.mxu0 0
  %910 = vmatpush1.bf16.msra.mxu0 0
  %911 = vmatprep.subr.bf16.mxu0 0
  %912 = vmatpush1.bf16.msra.mxu0 0
  %913 = vmatprep.mubr.bf16.mxu0 %v858
  %914 = vmatmul.mubr.bf16.gmra.mrb[0].mxu0 %v762
  %v915 = vpop.f32.mrb[0].mxu0
  %v916 = vadd.f32 %v801, %v915
  %v917 = vpop.f32.mrb[0].mxu0
  %v918 = vpop.f32.mrb[0].mxu0
  %v919 = vadd.f32 %v801, %v918
  %v920 = vpop.f32.mrb[0].mxu0
  %921 = vmatprep.mubr.bf16.mxu0 %v861
  %922 = vmatmul.mubr.bf16.gmra.mrb[0].mxu0 %v764
  %v923 = vpop.f32.mrb[0].mxu0
  %v924 = vadd.f32 %v801, %v923
  %v925 = vpop.f32.mrb[0].mxu0
  %v926 = vpop.f32.mrb[0].mxu0
  %v927 = vadd.f32 %v801, %v926
  %v928 = vpop.f32.mrb[0].mxu0
  %929 = vmatprep.mubr.bf16.mxu0 %v864
  %930 = vmatmul.mubr.bf16.gmra.mrb[0].mxu0 %v766
  %v931 = vpop.f32.mrb[0].mxu0
  %v932 = vadd.f32 %v801, %v931
  %v933 = vpop.f32.mrb[0].mxu0
  %v934 = vpop.f32.mrb[0].mxu0
  %v935 = vadd.f32 %v801, %v934
  %v936 = vpop.f32.mrb[0].mxu0
  %937 = vmatprep.mubr.bf16.mxu0 %v867
  %938 = vmatmul.mubr.bf16.gmra.mrb[0].mxu0 %v768
  %v939 = vpop.f32.mrb[0].mxu0
  %v940 = vadd.f32 %v801, %v939
  %v941 = vpop.f32.mrb[0].mxu0
  %v942 = vpop.f32.mrb[0].mxu0
  %v943 = vadd.f32 %v801, %v942
  %v944 = vpop.f32.mrb[0].mxu0
  %945 = vmatprep.mubr.bf16.mxu0 %v870
  %946 = vmatmul.mubr.bf16.gmra.mrb[0].mxu0 %v770
  %v947 = vpop.f32.mrb[0].mxu0
  %v948 = vadd.f32 %v801, %v947
  %v949 = vpop.f32.mrb[0].mxu0
  %v950 = vpop.f32.mrb[0].mxu0
  %v951 = vadd.f32 %v801, %v950
  %v952 = vpop.f32.mrb[0].mxu0
  %953 = vmatprep.mubr.bf16.mxu0 %v873
  %954 = vmatmul.mubr.bf16.gmra.mrb[0].mxu0 %v772
  %v955 = vpop.f32.mrb[0].mxu0
  %v956 = vadd.f32 %v801, %v955
  %v957 = vpop.f32.mrb[0].mxu0
  %v958 = vpop.f32.mrb[0].mxu0
  %v959 = vadd.f32 %v801, %v958
  %v960 = vpop.f32.mrb[0].mxu0
  %961 = vmatprep.mubr.bf16.mxu0 %v876
  %962 = vmatmul.mubr.bf16.gmra.mrb[0].mxu0 %v774
  %v963 = vpop.f32.mrb[0].mxu0
  %v964 = vadd.f32 %v801, %v963
  %v965 = vpop.f32.mrb[0].mxu0
  %v966 = vpop.f32.mrb[0].mxu0
  %v967 = vadd.f32 %v801, %v966
  %v968 = vpop.f32.mrb[0].mxu0
  %969 = vmatprep.mubr.bf16.mxu0 %v879
  %970 = vmatmul.mubr.bf16.gmra.mrb[0].mxu0 %v776
  %v971 = vpop.f32.mrb[0].mxu0
  %v972 = vadd.f32 %v801, %v971
  %v973 = vpop.f32.mrb[0].mxu0
  %v974 = vpop.f32.mrb[0].mxu0
  %v975 = vadd.f32 %v801, %v974
  %v976 = vpop.f32.mrb[0].mxu0
  %977 = vdwg.mxu0
  %994 = vrot.lane.b32.xlu0 %v916, 96
  %v995 = vpop.permute.xlu0 %994
  %996 = vrot.lane.b32.xlu0 %v919, 96
  %v997 = vpop.permute.xlu0 %996
  %998 = vrot.lane.b32.xlu0 %v924, 96
  %v999 = vpop.permute.xlu0 %998
  %1000 = vrot.lane.b32.xlu0 %v927, 96
  %v1001 = vpop.permute.xlu0 %1000
  %1002 = vrot.lane.b32.xlu0 %v932, 96
  %v1003 = vpop.permute.xlu0 %1002
  %1004 = vrot.lane.b32.xlu0 %v935, 96
  %v1005 = vpop.permute.xlu0 %1004
  %1006 = vrot.lane.b32.xlu0 %v940, 96
  %v1007 = vpop.permute.xlu0 %1006
  %1008 = vrot.lane.b32.xlu0 %v943, 96
  %v1009 = vpop.permute.xlu0 %1008
  %1010 = vrot.lane.b32.xlu0 %v948, 96
  %v1011 = vpop.permute.xlu0 %1010
  %1012 = vrot.lane.b32.xlu0 %v951, 96
  %v1013 = vpop.permute.xlu0 %1012
  %1014 = vrot.lane.b32.xlu0 %v956, 96
  %v1015 = vpop.permute.xlu0 %1014
  %1016 = vrot.lane.b32.xlu0 %v959, 96
  %v1017 = vpop.permute.xlu0 %1016
  %1018 = vrot.lane.b32.xlu0 %v964, 96
  %v1019 = vpop.permute.xlu0 %1018
  %1020 = vrot.lane.b32.xlu0 %v967, 96
  %v1021 = vpop.permute.xlu0 %1020
  %1022 = vrot.lane.b32.xlu0 %v972, 96
  %v1023 = vpop.permute.xlu0 %1022
  %1024 = vrot.lane.b32.xlu0 %v975, 96
  %v1025 = vpop.permute.xlu0 %1024
  %v1042 = vmul.f32 %v916, %v995
  %v1043 = vmul.f32 %v919, %v997
  %v1044 = vmul.f32 %v924, %v999
  %v1045 = vmul.f32 %v927, %v1001
  %v1046 = vmul.f32 %v932, %v1003
  %v1047 = vmul.f32 %v935, %v1005
  %v1048 = vmul.f32 %v940, %v1007
  %v1049 = vmul.f32 %v943, %v1009
  %v1050 = vmul.f32 %v948, %v1011
  %v1051 = vmul.f32 %v951, %v1013
  %v1052 = vmul.f32 %v956, %v1015
  %v1053 = vmul.f32 %v959, %v1017
  %v1054 = vmul.f32 %v964, %v1019
  %v1055 = vmul.f32 %v967, %v1021
  %v1056 = vmul.f32 %v972, %v1023
  %v1057 = vmul.f32 %v975, %v1025
  %vm1058 = vcmask 261120
  %v1059 = vsel %vm1058, %v1042, 0.0
  %v1060 = vsel %vm1058, %v1043, 0.0
  %v1061 = vadd.f32 %v1059, %v1060
  %v1062 = vsel %vm1058, %v1044, 0.0
  %v1063 = vadd.f32 %v1061, %v1062
  %v1064 = vsel %vm1058, %v1045, 0.0
  %v1065 = vadd.f32 %v1063, %v1064
  %v1066 = vsel %vm1058, %v1046, 0.0
  %v1067 = vadd.f32 %v1065, %v1066
  %v1068 = vsel %vm1058, %v1047, 0.0
  %v1069 = vadd.f32 %v1067, %v1068
  %v1070 = vsel %vm1058, %v1048, 0.0
  %v1071 = vadd.f32 %v1069, %v1070
  %v1072 = vsel %vm1058, %v1049, 0.0
  %v1073 = vadd.f32 %v1071, %v1072
  %v1074 = vsel %vm1058, %v1050, 0.0
  %v1075 = vadd.f32 %v1073, %v1074
  %v1076 = vsel %vm1058, %v1051, 0.0
  %v1077 = vadd.f32 %v1075, %v1076
  %v1078 = vsel %vm1058, %v1052, 0.0
  %v1079 = vadd.f32 %v1077, %v1078
  %v1080 = vsel %vm1058, %v1053, 0.0
  %v1081 = vadd.f32 %v1079, %v1080
  %v1082 = vsel %vm1058, %v1054, 0.0
  %v1083 = vadd.f32 %v1081, %v1082
  %v1084 = vsel %vm1058, %v1055, 0.0
  %v1085 = vadd.f32 %v1083, %v1084
  %v1086 = vsel %vm1058, %v1056, 0.0
  %v1087 = vadd.f32 %v1085, %v1086
  %v1088 = vsel %vm1058, %v1057, 0.0
  %v1089 = vadd.f32 %v1087, %v1088
  %1090 = vadd.xlane.f32.xlu0 %v1089
  %v1091 = vpop.xlane.xlu0 %1090
  %v1092 = vrot.slane %v1091, 4
  %v1093 = vadd.f32 %v1091, %v1092
  %v1094 = vrot.slane %v1093, 2
  %v1095 = vadd.f32 %v1093, %v1094
  %v1096 = vrot.slane %v1095, 1
  %v1097 = vadd.f32 %v1095, %v1096
  %s1098 = vtos %v1097
  %v1099 = vstv %s1098
  %v1100 = vmul.f32 %v1099, 0.25
  %v1101 = vld [vmem:[%s3] sm:$0xff]
  %v1102 = vld [vmem:[%s3 + $0x8] sm:$0xff]
  %v1103 = vld [vmem:[%s3 + $0x10] sm:$0xff]
  %v1104 = vld [vmem:[%s3 + $0x18] sm:$0xff]
  %v1106 = vsel %vm1058, %v1042, 0
  %v1109 = vsel %vm1058, %v1043, 0
  %v1112 = vsel %vm1058, %v1044, 0
  %v1115 = vsel %vm1058, %v1045, 0
  %v1118 = vsel %vm1058, %v1046, 0
  %v1121 = vsel %vm1058, %v1047, 0
  %v1124 = vsel %vm1058, %v1048, 0
  %v1127 = vsel %vm1058, %v1049, 0
  %v1130 = vsel %vm1058, %v1050, 0
  %v1133 = vsel %vm1058, %v1051, 0
  %v1136 = vsel %vm1058, %v1052, 0
  %v1139 = vsel %vm1058, %v1053, 0
  %v1142 = vsel %vm1058, %v1054, 0
  %v1145 = vsel %vm1058, %v1055, 0
  %v1148 = vsel %vm1058, %v1056, 0
  %v1151 = vsel %vm1058, %v1057, 0
  %1153 = vmatprep.subr.mxu0 0.0
  %1154 = vmatpush1.msra.mxu0 %v1101
  %1155 = vmatprep.subr.mxu0 0.0
  %1156 = vmatpush1.msra.mxu0 %v1102
  %1157 = vmatprep.subr.mxu0 0.0
  %1158 = vmatpush1.msra.mxu0 %v1103
  %1159 = vmatprep.subr.mxu0 0.0
  %1160 = vmatpush1.msra.mxu0 %v1104
  %1161 = vmatprep.subr.mxu0 0.0
  %1162 = vmatpush1.msra.mxu0 0.0
  %1163 = vmatprep.subr.mxu0 0.0
  %1164 = vmatpush1.msra.mxu0 0.0
  %1165 = vmatprep.subr.mxu0 0.0
  %1166 = vmatpush1.msra.mxu0 0.0
  %1167 = vmatprep.subr.mxu0 0.0
  %1168 = vmatpush1.msra.mxu0 0.0
  %1169 = vmatprep.subr.mxu0 0.0
  %1170 = vmatpush1.msra.mxu0 0.0
  %1171 = vmatprep.subr.mxu0 0.0
  %1172 = vmatpush1.msra.mxu0 0.0
  %1173 = vmatprep.subr.mxu0 0.0
  %1174 = vmatpush1.msra.mxu0 0.0
  %1175 = vmatprep.subr.mxu0 0.0
  %1176 = vmatpush1.msra.mxu0 0.0
  %1177 = vmatprep.subr.mxu0 0.0
  %1178 = vmatpush1.msra.mxu0 0.0
  %1179 = vmatprep.subr.mxu0 0.0
  %1180 = vmatpush1.msra.mxu0 0.0
  %1181 = vmatprep.subr.mxu0 0.0
  %1182 = vmatpush1.msra.mxu0 0.0
  %1183 = vmatprep.subr.mxu0 0.0
  %1184 = vmatpush1.msra.mxu0 0.0
  %1185 = vmatprep.subr.mxu0 0.0
  %1186 = vmatpush1.msra.mxu0 0.0
  %1187 = vmatprep.subr.mxu0 0.0
  %1188 = vmatpush1.msra.mxu0 0.0
  %1189 = vmatprep.subr.mxu0 0.0
  %1190 = vmatpush1.msra.mxu0 0.0
  %1191 = vmatprep.subr.mxu0 0.0
  %1192 = vmatpush1.msra.mxu0 0.0
  %1193 = vmatprep.subr.mxu0 0.0
  %1194 = vmatpush1.msra.mxu0 0.0
  %1195 = vmatprep.subr.mxu0 0.0
  %1196 = vmatpush1.msra.mxu0 0.0
  %1197 = vmatprep.subr.mxu0 0.0
  %1198 = vmatpush1.msra.mxu0 0.0
  %1199 = vmatprep.subr.mxu0 0.0
  %1200 = vmatpush1.msra.mxu0 0.0
  %1201 = vmatprep.subr.mxu0 0.0
  %1202 = vmatpush1.msra.mxu0 0.0
  %1203 = vmatprep.subr.mxu0 0.0
  %1204 = vmatpush1.msra.mxu0 0.0
  %1205 = vmatprep.subr.mxu0 0.0
  %1206 = vmatpush1.msra.mxu0 0.0
  %1207 = vmatprep.subr.mxu0 0.0
  %1208 = vmatpush1.msra.mxu0 0.0
  %1209 = vmatprep.subr.mxu0 0.0
  %1210 = vmatpush1.msra.mxu0 0.0
  %1211 = vmatprep.subr.mxu0 0.0
  %1212 = vmatpush1.msra.mxu0 0.0
  %1213 = vmatprep.subr.mxu0 0.0
  %1214 = vmatpush1.msra.mxu0 0.0
  %1215 = vmatprep.subr.mxu0 0.0
  %1216 = vmatpush1.msra.mxu0 0.0
  %1217 = vmatprep.mubr.f32.mxu0 0.0
  %1218 = vmatmul.mubr.f32.gmra.mrb[0].mxu0 %v1106
  %v1219 = vpop.f32.mrb[0].mxu0
  %v1220 = vadd.f32 0.0, %v1219
  %v1221 = vpop.f32.mrb[0].mxu0
  %1222 = vmatprep.mubr.f32.mxu0 0.0
  %1223 = vmatmul.mubr.f32.gmra.mrb[0].mxu0 %v1109
  %v1224 = vpop.f32.mrb[0].mxu0
  %v1225 = vadd.f32 0.0, %v1224
  %v1226 = vpop.f32.mrb[0].mxu0
  %1227 = vmatprep.mubr.f32.mxu0 0.0
  %1228 = vmatmul.mubr.f32.gmra.mrb[0].mxu0 %v1112
  %v1229 = vpop.f32.mrb[0].mxu0
  %v1230 = vadd.f32 0.0, %v1229
  %v1231 = vpop.f32.mrb[0].mxu0
  %1232 = vmatprep.mubr.f32.mxu0 0.0
  %1233 = vmatmul.mubr.f32.gmra.mrb[0].mxu0 %v1115
  %v1234 = vpop.f32.mrb[0].mxu0
  %v1235 = vadd.f32 0.0, %v1234
  %v1236 = vpop.f32.mrb[0].mxu0
  %1237 = vmatprep.mubr.f32.mxu0 0.0
  %1238 = vmatmul.mubr.f32.gmra.mrb[0].mxu0 %v1118
  %v1239 = vpop.f32.mrb[0].mxu0
  %v1240 = vadd.f32 0.0, %v1239
  %v1241 = vpop.f32.mrb[0].mxu0
  %1242 = vmatprep.mubr.f32.mxu0 0.0
  %1243 = vmatmul.mubr.f32.gmra.mrb[0].mxu0 %v1121
  %v1244 = vpop.f32.mrb[0].mxu0
  %v1245 = vadd.f32 0.0, %v1244
  %v1246 = vpop.f32.mrb[0].mxu0
  %1247 = vmatprep.mubr.f32.mxu0 0.0
  %1248 = vmatmul.mubr.f32.gmra.mrb[0].mxu0 %v1124
  %v1249 = vpop.f32.mrb[0].mxu0
  %v1250 = vadd.f32 0.0, %v1249
  %v1251 = vpop.f32.mrb[0].mxu0
  %1252 = vmatprep.mubr.f32.mxu0 0.0
  %1253 = vmatmul.mubr.f32.gmra.mrb[0].mxu0 %v1127
  %v1254 = vpop.f32.mrb[0].mxu0
  %v1255 = vadd.f32 0.0, %v1254
  %v1256 = vpop.f32.mrb[0].mxu0
  %1257 = vmatprep.mubr.f32.mxu0 0.0
  %1258 = vmatmul.mubr.f32.gmra.mrb[0].mxu0 %v1130
  %v1259 = vpop.f32.mrb[0].mxu0
  %v1260 = vadd.f32 0.0, %v1259
  %v1261 = vpop.f32.mrb[0].mxu0
  %1262 = vmatprep.mubr.f32.mxu0 0.0
  %1263 = vmatmul.mubr.f32.gmra.mrb[0].mxu0 %v1133
  %v1264 = vpop.f32.mrb[0].mxu0
  %v1265 = vadd.f32 0.0, %v1264
  %v1266 = vpop.f32.mrb[0].mxu0
  %1267 = vmatprep.mubr.f32.mxu0 0.0
  %1268 = vmatmul.mubr.f32.gmra.mrb[0].mxu0 %v1136
  %v1269 = vpop.f32.mrb[0].mxu0
  %v1270 = vadd.f32 0.0, %v1269
  %v1271 = vpop.f32.mrb[0].mxu0
  %1272 = vmatprep.mubr.f32.mxu0 0.0
  %1273 = vmatmul.mubr.f32.gmra.mrb[0].mxu0 %v1139
  %v1274 = vpop.f32.mrb[0].mxu0
  %v1275 = vadd.f32 0.0, %v1274
  %v1276 = vpop.f32.mrb[0].mxu0
  %1277 = vmatprep.mubr.f32.mxu0 0.0
  %1278 = vmatmul.mubr.f32.gmra.mrb[0].mxu0 %v1142
  %v1279 = vpop.f32.mrb[0].mxu0
  %v1280 = vadd.f32 0.0, %v1279
  %v1281 = vpop.f32.mrb[0].mxu0
  %1282 = vmatprep.mubr.f32.mxu0 0.0
  %1283 = vmatmul.mubr.f32.gmra.mrb[0].mxu0 %v1145
  %v1284 = vpop.f32.mrb[0].mxu0
  %v1285 = vadd.f32 0.0, %v1284
  %v1286 = vpop.f32.mrb[0].mxu0
  %1287 = vmatprep.mubr.f32.mxu0 0.0
  %1288 = vmatmul.mubr.f32.gmra.mrb[0].mxu0 %v1148
  %v1289 = vpop.f32.mrb[0].mxu0
  %v1290 = vadd.f32 0.0, %v1289
  %v1291 = vpop.f32.mrb[0].mxu0
  %1292 = vmatprep.mubr.f32.mxu0 0.0
  %1293 = vmatmul.mubr.f32.gmra.mrb[0].mxu0 %v1151
  %v1294 = vpop.f32.mrb[0].mxu0
  %v1295 = vadd.f32 0.0, %v1294
  %v1296 = vpop.f32.mrb[0].mxu0
  %1297 = vdwg.mxu0
  %v1298 = vpack.c.bf16 %v919, %v916
  %v1299 = vpack.c.bf16 %v927, %v924
  %v1300 = vpack.c.bf16 %v935, %v932
  %v1301 = vpack.c.bf16 %v943, %v940
  %v1302 = vpack.c.bf16 %v951, %v948
  %v1303 = vpack.c.bf16 %v959, %v956
  %v1304 = vpack.c.bf16 %v967, %v964
  %v1305 = vpack.c.bf16 %v975, %v972
  %1310 = vrot.lane.b32.xlu0 %v1298, 96
  %v1311 = vpop.permute.xlu0 %1310
  %1312 = vrot.lane.b32.xlu0 %v1299, 96
  %v1313 = vpop.permute.xlu0 %1312
  %1314 = vrot.lane.b32.xlu0 %v1300, 96
  %v1315 = vpop.permute.xlu0 %1314
  %1316 = vrot.lane.b32.xlu0 %v1301, 96
  %v1317 = vpop.permute.xlu0 %1316
  %1322 = vxpose.xlu0.c.b16.start [1/8] %v1311, 128
  %1323 = vxpose.xlu0.c.b16.cont [2/8] %v1313, 128
  %1324 = vxpose.xlu0.c.b16.cont [3/8] %v1315, 128
  %1325 = vxpose.xlu0.c.b16.cont [4/8] %v1317, 128
  %1326 = vxpose.xlu0.c.b16.cont [5/8] 0, 128
  %1327 = vxpose.xlu0.c.b16.cont [6/8] 0, 128
  %1328 = vxpose.xlu0.c.b16.cont [7/8] 0, 128
  %1329 = vxpose.xlu0.c.b16.end [8/8] 0, 128
  %v1330 = vpop.trf.xlu0
  %v1331 = vpop.trf.xlu0
  %v1332 = vpop.trf.xlu0
  %v1333 = vpop.trf.xlu0
  %v1334 = vpop.trf.xlu0
  %v1335 = vpop.trf.xlu0
  %v1336 = vpop.trf.xlu0
  %v1337 = vpop.trf.xlu0
  %1338 = vrot.lane.b32.xlu0 %v1298, 64
  %v1339 = vpop.permute.xlu0 %1338
  %1340 = vrot.lane.b32.xlu0 %v1299, 64
  %v1341 = vpop.permute.xlu0 %1340
  %1342 = vrot.lane.b32.xlu0 %v1300, 64
  %v1343 = vpop.permute.xlu0 %1342
  %1344 = vrot.lane.b32.xlu0 %v1301, 64
  %v1345 = vpop.permute.xlu0 %1344
  %vm1350 = vcmask 523264
  %v1352 = vsel %vm1350, %v1330, 0
  %v1355 = vsel %vm1350, %v1331, 0
  %1357 = vmatprep.subr.bf16.mxu0 0
  %1358 = vmatpush1.bf16.msra.mxu0 %v1339
  %1359 = vmatprep.subr.bf16.mxu0 0
  %1360 = vmatpush1.bf16.msra.mxu0 %v1341
  %1361 = vmatprep.subr.bf16.mxu0 0
  %1362 = vmatpush1.bf16.msra.mxu0 %v1343
  %1363 = vmatprep.subr.bf16.mxu0 0
  %1364 = vmatpush1.bf16.msra.mxu0 %v1345
  %1365 = vmatprep.subr.bf16.mxu0 0
  %1366 = vmatpush1.bf16.msra.mxu0 0
  %1367 = vmatprep.subr.bf16.mxu0 0
  %1368 = vmatpush1.bf16.msra.mxu0 0
  %1369 = vmatprep.subr.bf16.mxu0 0
  %1370 = vmatpush1.bf16.msra.mxu0 0
  %1371 = vmatprep.subr.bf16.mxu0 0
  %1372 = vmatpush1.bf16.msra.mxu0 0
  %1373 = vmatprep.subr.bf16.mxu0 0
  %1374 = vmatpush1.bf16.msra.mxu0 0
  %1375 = vmatprep.subr.bf16.mxu0 0
  %1376 = vmatpush1.bf16.msra.mxu0 0
  %1377 = vmatprep.subr.bf16.mxu0 0
  %1378 = vmatpush1.bf16.msra.mxu0 0
  %1379 = vmatprep.subr.bf16.mxu0 0
  %1380 = vmatpush1.bf16.msra.mxu0 0
  %1381 = vmatprep.subr.bf16.mxu0 0
  %1382 = vmatpush1.bf16.msra.mxu0 0
  %1383 = vmatprep.subr.bf16.mxu0 0
  %1384 = vmatpush1.bf16.msra.mxu0 0
  %1385 = vmatprep.subr.bf16.mxu0 0
  %1386 = vmatpush1.bf16.msra.mxu0 0
  %1387 = vmatprep.subr.bf16.mxu0 0
  %1388 = vmatpush1.bf16.msra.mxu0 0
  %1389 = vmatprep.mubr.bf16.mxu0 0
  %1390 = vmatmul.mubr.bf16.gmra.mrb[0].mxu0 %v1352
  %v1391 = vpop.f32.mrb[0].mxu0
  %v1392 = vadd.f32 0.0, %v1391
  %v1393 = vpop.f32.mrb[0].mxu0
  %v1394 = vpop.f32.mrb[0].mxu0
  %v1395 = vadd.f32 0.0, %v1394
  %v1396 = vpop.f32.mrb[0].mxu0
  %1397 = vmatprep.mubr.bf16.mxu0 0
  %1398 = vmatmul.mubr.bf16.gmra.mrb[0].mxu0 %v1355
  %v1399 = vpop.f32.mrb[0].mxu0
  %v1400 = vadd.f32 0.0, %v1399
  %v1401 = vpop.f32.mrb[0].mxu0
  %v1402 = vpop.f32.mrb[0].mxu0
  %v1403 = vadd.f32 0.0, %v1402
  %v1404 = vpop.f32.mrb[0].mxu0
  %1405 = vdwg.mxu0
  %v1406 = vmul.f32 %v1392, %v1101
  %v1407 = vmul.f32 %v1395, %v1102
  %v1408 = vmul.f32 %v1400, %v1103
  %v1409 = vmul.f32 %v1403, %v1104
  %v1410 = vpack.c.bf16 %v1407, %v1406
  %v1411 = vpack.c.bf16 %v1409, %v1408
  %v1413 = vsel %vm1058, %v1298, 0
  %v1416 = vsel %vm1058, %v1299, 0
  %v1419 = vsel %vm1058, %v1300, 0
  %v1422 = vsel %vm1058, %v1301, 0
  %1424 = vmatprep.subr.bf16.mxu0 0
  %1425 = vmatpush1.bf16.msra.mxu0 %v1410
  %1426 = vmatprep.subr.bf16.mxu0 0
  %1427 = vmatpush1.bf16.msra.mxu0 %v1411
  %1428 = vmatprep.subr.bf16.mxu0 0
  %1429 = vmatpush1.bf16.msra.mxu0 0
  %1430 = vmatprep.subr.bf16.mxu0 0
  %1431 = vmatpush1.bf16.msra.mxu0 0
  %1432 = vmatprep.subr.bf16.mxu0 0
  %1433 = vmatpush1.bf16.msra.mxu0 0
  %1434 = vmatprep.subr.bf16.mxu0 0
  %1435 = vmatpush1.bf16.msra.mxu0 0
  %1436 = vmatprep.subr.bf16.mxu0 0
  %1437 = vmatpush1.bf16.msra.mxu0 0
  %1438 = vmatprep.subr.bf16.mxu0 0
  %1439 = vmatpush1.bf16.msra.mxu0 0
  %1440 = vmatprep.subr.bf16.mxu0 0
  %1441 = vmatpush1.bf16.msra.mxu0 0
  %1442 = vmatprep.subr.bf16.mxu0 0
  %1443 = vmatpush1.bf16.msra.mxu0 0
  %1444 = vmatprep.subr.bf16.mxu0 0
  %1445 = vmatpush1.bf16.msra.mxu0 0
  %1446 = vmatprep.subr.bf16.mxu0 0
  %1447 = vmatpush1.bf16.msra.mxu0 0
  %1448 = vmatprep.subr.bf16.mxu0 0
  %1449 = vmatpush1.bf16.msra.mxu0 0
  %1450 = vmatprep.subr.bf16.mxu0 0
  %1451 = vmatpush1.bf16.msra.mxu0 0
  %1452 = vmatprep.subr.bf16.mxu0 0
  %1453 = vmatpush1.bf16.msra.mxu0 0
  %1454 = vmatprep.subr.bf16.mxu0 0
  %1455 = vmatpush1.bf16.msra.mxu0 0
  %1456 = vmatprep.mubr.bf16.mxu0 0
  %1457 = vmatmul.mubr.bf16.gmra.mrb[0].mxu0 %v1413
  %v1458 = vpop.f32.mrb[0].mxu0
  %v1459 = vadd.f32 0.0, %v1458
  %v1460 = vpop.f32.mrb[0].mxu0
  %v1461 = vpop.f32.mrb[0].mxu0
  %v1462 = vadd.f32 0.0, %v1461
  %v1463 = vpop.f32.mrb[0].mxu0
  %1464 = vmatprep.mubr.bf16.mxu0 0
  %1465 = vmatmul.mubr.bf16.gmra.mrb[0].mxu0 %v1416
  %v1466 = vpop.f32.mrb[0].mxu0
  %v1467 = vadd.f32 0.0, %v1466
  %v1468 = vpop.f32.mrb[0].mxu0
  %v1469 = vpop.f32.mrb[0].mxu0
  %v1470 = vadd.f32 0.0, %v1469
  %v1471 = vpop.f32.mrb[0].mxu0
  %1472 = vmatprep.mubr.bf16.mxu0 0
  %1473 = vmatmul.mubr.bf16.gmra.mrb[0].mxu0 %v1419
  %v1474 = vpop.f32.mrb[0].mxu0
  %v1475 = vadd.f32 0.0, %v1474
  %v1476 = vpop.f32.mrb[0].mxu0
  %v1477 = vpop.f32.mrb[0].mxu0
  %v1478 = vadd.f32 0.0, %v1477
  %v1479 = vpop.f32.mrb[0].mxu0
  %1480 = vmatprep.mubr.bf16.mxu0 0
  %1481 = vmatmul.mubr.bf16.gmra.mrb[0].mxu0 %v1422
  %v1482 = vpop.f32.mrb[0].mxu0
  %v1483 = vadd.f32 0.0, %v1482
  %v1484 = vpop.f32.mrb[0].mxu0
  %v1485 = vpop.f32.mrb[0].mxu0
  %v1486 = vadd.f32 0.0, %v1485
  %v1487 = vpop.f32.mrb[0].mxu0
  %1488 = vdwg.mxu0
  %1493 = vrot.lane.b32.xlu0 %v1302, 96
  %v1494 = vpop.permute.xlu0 %1493
  %1495 = vrot.lane.b32.xlu0 %v1303, 96
  %v1496 = vpop.permute.xlu0 %1495
  %1497 = vrot.lane.b32.xlu0 %v1304, 96
  %v1498 = vpop.permute.xlu0 %1497
  %1499 = vrot.lane.b32.xlu0 %v1305, 96
  %v1500 = vpop.permute.xlu0 %1499
  %1505 = vxpose.xlu0.c.b16.start [1/8] %v1494, 128
  %1506 = vxpose.xlu0.c.b16.cont [2/8] %v1496, 128
  %1507 = vxpose.xlu0.c.b16.cont [3/8] %v1498, 128
  %1508 = vxpose.xlu0.c.b16.cont [4/8] %v1500, 128
  %1509 = vxpose.xlu0.c.b16.cont [5/8] 0, 128
  %1510 = vxpose.xlu0.c.b16.cont [6/8] 0, 128
  %1511 = vxpose.xlu0.c.b16.cont [7/8] 0, 128
  %1512 = vxpose.xlu0.c.b16.end [8/8] 0, 128
  %v1513 = vpop.trf.xlu0
  %v1514 = vpop.trf.xlu0
  %v1515 = vpop.trf.xlu0
  %v1516 = vpop.trf.xlu0
  %v1517 = vpop.trf.xlu0
  %v1518 = vpop.trf.xlu0
  %v1519 = vpop.trf.xlu0
  %v1520 = vpop.trf.xlu0
  %1521 = vrot.lane.b32.xlu0 %v1302, 64
  %v1522 = vpop.permute.xlu0 %1521
  %1523 = vrot.lane.b32.xlu0 %v1303, 64
  %v1524 = vpop.permute.xlu0 %1523
  %1525 = vrot.lane.b32.xlu0 %v1304, 64
  %v1526 = vpop.permute.xlu0 %1525
  %1527 = vrot.lane.b32.xlu0 %v1305, 64
  %v1528 = vpop.permute.xlu0 %1527
  %v1534 = vsel %vm1350, %v1513, 0
  %v1537 = vsel %vm1350, %v1514, 0
  %1539 = vmatprep.subr.bf16.mxu0 0
  %1540 = vmatpush1.bf16.msra.mxu0 %v1522
  %1541 = vmatprep.subr.bf16.mxu0 0
  %1542 = vmatpush1.bf16.msra.mxu0 %v1524
  %1543 = vmatprep.subr.bf16.mxu0 0
  %1544 = vmatpush1.bf16.msra.mxu0 %v1526
  %1545 = vmatprep.subr.bf16.mxu0 0
  %1546 = vmatpush1.bf16.msra.mxu0 %v1528
  %1547 = vmatprep.subr.bf16.mxu0 0
  %1548 = vmatpush1.bf16.msra.mxu0 0
  %1549 = vmatprep.subr.bf16.mxu0 0
  %1550 = vmatpush1.bf16.msra.mxu0 0
  %1551 = vmatprep.subr.bf16.mxu0 0
  %1552 = vmatpush1.bf16.msra.mxu0 0
  %1553 = vmatprep.subr.bf16.mxu0 0
  %1554 = vmatpush1.bf16.msra.mxu0 0
  %1555 = vmatprep.subr.bf16.mxu0 0
  %1556 = vmatpush1.bf16.msra.mxu0 0
  %1557 = vmatprep.subr.bf16.mxu0 0
  %1558 = vmatpush1.bf16.msra.mxu0 0
  %1559 = vmatprep.subr.bf16.mxu0 0
  %1560 = vmatpush1.bf16.msra.mxu0 0
  %1561 = vmatprep.subr.bf16.mxu0 0
  %1562 = vmatpush1.bf16.msra.mxu0 0
  %1563 = vmatprep.subr.bf16.mxu0 0
  %1564 = vmatpush1.bf16.msra.mxu0 0
  %1565 = vmatprep.subr.bf16.mxu0 0
  %1566 = vmatpush1.bf16.msra.mxu0 0
  %1567 = vmatprep.subr.bf16.mxu0 0
  %1568 = vmatpush1.bf16.msra.mxu0 0
  %1569 = vmatprep.subr.bf16.mxu0 0
  %1570 = vmatpush1.bf16.msra.mxu0 0
  %1571 = vmatprep.mubr.bf16.mxu0 0
  %1572 = vmatmul.mubr.bf16.gmra.mrb[0].mxu0 %v1534
  %v1573 = vpop.f32.mrb[0].mxu0
  %v1574 = vadd.f32 0.0, %v1573
  %v1575 = vpop.f32.mrb[0].mxu0
  %v1576 = vpop.f32.mrb[0].mxu0
  %v1577 = vadd.f32 0.0, %v1576
  %v1578 = vpop.f32.mrb[0].mxu0
  %1579 = vmatprep.mubr.bf16.mxu0 0
  %1580 = vmatmul.mubr.bf16.gmra.mrb[0].mxu0 %v1537
  %v1581 = vpop.f32.mrb[0].mxu0
  %v1582 = vadd.f32 0.0, %v1581
  %v1583 = vpop.f32.mrb[0].mxu0
  %v1584 = vpop.f32.mrb[0].mxu0
  %v1585 = vadd.f32 0.0, %v1584
  %v1586 = vpop.f32.mrb[0].mxu0
  %1587 = vdwg.mxu0
  %v1588 = vmul.f32 %v1574, %v1101
  %v1589 = vmul.f32 %v1577, %v1102
  %v1590 = vmul.f32 %v1582, %v1103
  %v1591 = vmul.f32 %v1585, %v1104
  %v1592 = vpack.c.bf16 %v1589, %v1588
  %v1593 = vpack.c.bf16 %v1591, %v1590
  %v1595 = vsel %vm1058, %v1302, 0
  %v1598 = vsel %vm1058, %v1303, 0
  %v1601 = vsel %vm1058, %v1304, 0
  %v1604 = vsel %vm1058, %v1305, 0
  %1606 = vmatprep.subr.bf16.mxu0 0
  %1607 = vmatpush1.bf16.msra.mxu0 %v1592
  %1608 = vmatprep.subr.bf16.mxu0 0
  %1609 = vmatpush1.bf16.msra.mxu0 %v1593
  %1610 = vmatprep.subr.bf16.mxu0 0
  %1611 = vmatpush1.bf16.msra.mxu0 0
  %1612 = vmatprep.subr.bf16.mxu0 0
  %1613 = vmatpush1.bf16.msra.mxu0 0
  %1614 = vmatprep.subr.bf16.mxu0 0
  %1615 = vmatpush1.bf16.msra.mxu0 0
  %1616 = vmatprep.subr.bf16.mxu0 0
  %1617 = vmatpush1.bf16.msra.mxu0 0
  %1618 = vmatprep.subr.bf16.mxu0 0
  %1619 = vmatpush1.bf16.msra.mxu0 0
  %1620 = vmatprep.subr.bf16.mxu0 0
  %1621 = vmatpush1.bf16.msra.mxu0 0
  %1622 = vmatprep.subr.bf16.mxu0 0
  %1623 = vmatpush1.bf16.msra.mxu0 0
  %1624 = vmatprep.subr.bf16.mxu0 0
  %1625 = vmatpush1.bf16.msra.mxu0 0
  %1626 = vmatprep.subr.bf16.mxu0 0
  %1627 = vmatpush1.bf16.msra.mxu0 0
  %1628 = vmatprep.subr.bf16.mxu0 0
  %1629 = vmatpush1.bf16.msra.mxu0 0
  %1630 = vmatprep.subr.bf16.mxu0 0
  %1631 = vmatpush1.bf16.msra.mxu0 0
  %1632 = vmatprep.subr.bf16.mxu0 0
  %1633 = vmatpush1.bf16.msra.mxu0 0
  %1634 = vmatprep.subr.bf16.mxu0 0
  %1635 = vmatpush1.bf16.msra.mxu0 0
  %1636 = vmatprep.subr.bf16.mxu0 0
  %1637 = vmatpush1.bf16.msra.mxu0 0
  %1638 = vmatprep.mubr.bf16.mxu0 0
  %1639 = vmatmul.mubr.bf16.gmra.mrb[0].mxu0 %v1595
  %v1640 = vpop.f32.mrb[0].mxu0
  %v1641 = vadd.f32 0.0, %v1640
  %v1642 = vpop.f32.mrb[0].mxu0
  %v1643 = vpop.f32.mrb[0].mxu0
  %v1644 = vadd.f32 0.0, %v1643
  %v1645 = vpop.f32.mrb[0].mxu0
  %1646 = vmatprep.mubr.bf16.mxu0 0
  %1647 = vmatmul.mubr.bf16.gmra.mrb[0].mxu0 %v1598
  %v1648 = vpop.f32.mrb[0].mxu0
  %v1649 = vadd.f32 0.0, %v1648
  %v1650 = vpop.f32.mrb[0].mxu0
  %v1651 = vpop.f32.mrb[0].mxu0
  %v1652 = vadd.f32 0.0, %v1651
  %v1653 = vpop.f32.mrb[0].mxu0
  %1654 = vmatprep.mubr.bf16.mxu0 0
  %1655 = vmatmul.mubr.bf16.gmra.mrb[0].mxu0 %v1601
  %v1656 = vpop.f32.mrb[0].mxu0
  %v1657 = vadd.f32 0.0, %v1656
  %v1658 = vpop.f32.mrb[0].mxu0
  %v1659 = vpop.f32.mrb[0].mxu0
  %v1660 = vadd.f32 0.0, %v1659
  %v1661 = vpop.f32.mrb[0].mxu0
  %1662 = vmatprep.mubr.bf16.mxu0 0
  %1663 = vmatmul.mubr.bf16.gmra.mrb[0].mxu0 %v1604
  %v1664 = vpop.f32.mrb[0].mxu0
  %v1665 = vadd.f32 0.0, %v1664
  %v1666 = vpop.f32.mrb[0].mxu0
  %v1667 = vpop.f32.mrb[0].mxu0
  %v1668 = vadd.f32 0.0, %v1667
  %v1669 = vpop.f32.mrb[0].mxu0
  %1670 = vdwg.mxu0
  %v1671 = vmul.f32 %v1100, %v916
  %v1672 = vmul.f32 %v1100, %v919
  %v1673 = vmul.f32 %v1100, %v924
  %v1674 = vmul.f32 %v1100, %v927
  %v1675 = vmul.f32 %v1100, %v932
  %v1676 = vmul.f32 %v1100, %v935
  %v1677 = vmul.f32 %v1100, %v940
  %v1678 = vmul.f32 %v1100, %v943
  %v1679 = vmul.f32 %v1100, %v948
  %v1680 = vmul.f32 %v1100, %v951
  %v1681 = vmul.f32 %v1100, %v956
  %v1682 = vmul.f32 %v1100, %v959
  %v1683 = vmul.f32 %v1100, %v964
  %v1684 = vmul.f32 %v1100, %v967
  %v1685 = vmul.f32 %v1100, %v972
  %v1686 = vmul.f32 %v1100, %v975
  %1687 = vrot.lane.b32.xlu0 %v916, 64
  %v1688 = vpop.permute.xlu0 %1687
  %1689 = vrot.lane.b32.xlu0 %v919, 64
  %v1690 = vpop.permute.xlu0 %1689
  %1691 = vrot.lane.b32.xlu0 %v924, 64
  %v1692 = vpop.permute.xlu0 %1691
  %1693 = vrot.lane.b32.xlu0 %v927, 64
  %v1694 = vpop.permute.xlu0 %1693
  %1695 = vrot.lane.b32.xlu0 %v932, 64
  %v1696 = vpop.permute.xlu0 %1695
  %1697 = vrot.lane.b32.xlu0 %v935, 64
  %v1698 = vpop.permute.xlu0 %1697
  %1699 = vrot.lane.b32.xlu0 %v940, 64
  %v1700 = vpop.permute.xlu0 %1699
  %1701 = vrot.lane.b32.xlu0 %v943, 64
  %v1702 = vpop.permute.xlu0 %1701
  %1703 = vrot.lane.b32.xlu0 %v948, 64
  %v1704 = vpop.permute.xlu0 %1703
  %1705 = vrot.lane.b32.xlu0 %v951, 64
  %v1706 = vpop.permute.xlu0 %1705
  %1707 = vrot.lane.b32.xlu0 %v956, 64
  %v1708 = vpop.permute.xlu0 %1707
  %1709 = vrot.lane.b32.xlu0 %v959, 64
  %v1710 = vpop.permute.xlu0 %1709
  %1711 = vrot.lane.b32.xlu0 %v964, 64
  %v1712 = vpop.permute.xlu0 %1711
  %1713 = vrot.lane.b32.xlu0 %v967, 64
  %v1714 = vpop.permute.xlu0 %1713
  %1715 = vrot.lane.b32.xlu0 %v972, 64
  %v1716 = vpop.permute.xlu0 %1715
  %1717 = vrot.lane.b32.xlu0 %v975, 64
  %v1718 = vpop.permute.xlu0 %1717
  %v1735 = vmul.f32 %v1220, %v1688
  %v1736 = vmul.f32 %v1225, %v1690
  %v1737 = vmul.f32 %v1230, %v1692
  %v1738 = vmul.f32 %v1235, %v1694
  %v1739 = vmul.f32 %v1240, %v1696
  %v1740 = vmul.f32 %v1245, %v1698
  %v1741 = vmul.f32 %v1250, %v1700
  %v1742 = vmul.f32 %v1255, %v1702
  %v1743 = vmul.f32 %v1260, %v1704
  %v1744 = vmul.f32 %v1265, %v1706
  %v1745 = vmul.f32 %v1270, %v1708
  %v1746 = vmul.f32 %v1275, %v1710
  %v1747 = vmul.f32 %v1280, %v1712
  %v1748 = vmul.f32 %v1285, %v1714
  %v1749 = vmul.f32 %v1290, %v1716
  %v1750 = vmul.f32 %v1295, %v1718
  %v1751 = vsub.f32 %v1459, %v1735
  %v1752 = vsub.f32 %v1462, %v1736
  %v1753 = vsub.f32 %v1467, %v1737
  %v1754 = vsub.f32 %v1470, %v1738
  %v1755 = vsub.f32 %v1475, %v1739
  %v1756 = vsub.f32 %v1478, %v1740
  %v1757 = vsub.f32 %v1483, %v1741
  %v1758 = vsub.f32 %v1486, %v1742
  %v1759 = vsub.f32 %v1641, %v1743
  %v1760 = vsub.f32 %v1644, %v1744
  %v1761 = vsub.f32 %v1649, %v1745
  %v1762 = vsub.f32 %v1652, %v1746
  %v1763 = vsub.f32 %v1657, %v1747
  %v1764 = vsub.f32 %v1660, %v1748
  %v1765 = vsub.f32 %v1665, %v1749
  %v1766 = vsub.f32 %v1668, %v1750
  %v1767 = vmul.f32 %v1751, 0.25
  %v1768 = vmul.f32 %v1752, 0.25
  %v1769 = vmul.f32 %v1753, 0.25
  %v1770 = vmul.f32 %v1754, 0.25
  %v1771 = vmul.f32 %v1755, 0.25
  %v1772 = vmul.f32 %v1756, 0.25
  %v1773 = vmul.f32 %v1757, 0.25
  %v1774 = vmul.f32 %v1758, 0.25
  %v1775 = vmul.f32 %v1759, 0.25
  %v1776 = vmul.f32 %v1760, 0.25
  %v1777 = vmul.f32 %v1761, 0.25
  %v1778 = vmul.f32 %v1762, 0.25
  %v1779 = vmul.f32 %v1763, 0.25
  %v1780 = vmul.f32 %v1764, 0.25
  %v1781 = vmul.f32 %v1765, 0.25
  %v1782 = vmul.f32 %v1766, 0.25
  %1799 = vrot.lane.b32.xlu0 %v1767, 64
  %v1800 = vpop.permute.xlu0 %1799
  %1801 = vrot.lane.b32.xlu0 %v1768, 64
  %v1802 = vpop.permute.xlu0 %1801
  %1803 = vrot.lane.b32.xlu0 %v1769, 64
  %v1804 = vpop.permute.xlu0 %1803
  %1805 = vrot.lane.b32.xlu0 %v1770, 64
  %v1806 = vpop.permute.xlu0 %1805
  %1807 = vrot.lane.b32.xlu0 %v1771, 64
  %v1808 = vpop.permute.xlu0 %1807
  %1809 = vrot.lane.b32.xlu0 %v1772, 64
  %v1810 = vpop.permute.xlu0 %1809
  %1811 = vrot.lane.b32.xlu0 %v1773, 64
  %v1812 = vpop.permute.xlu0 %1811
  %1813 = vrot.lane.b32.xlu0 %v1774, 64
  %v1814 = vpop.permute.xlu0 %1813
  %1815 = vrot.lane.b32.xlu0 %v1775, 64
  %v1816 = vpop.permute.xlu0 %1815
  %1817 = vrot.lane.b32.xlu0 %v1776, 64
  %v1818 = vpop.permute.xlu0 %1817
  %1819 = vrot.lane.b32.xlu0 %v1777, 64
  %v1820 = vpop.permute.xlu0 %1819
  %1821 = vrot.lane.b32.xlu0 %v1778, 64
  %v1822 = vpop.permute.xlu0 %1821
  %1823 = vrot.lane.b32.xlu0 %v1779, 64
  %v1824 = vpop.permute.xlu0 %1823
  %1825 = vrot.lane.b32.xlu0 %v1780, 64
  %v1826 = vpop.permute.xlu0 %1825
  %1827 = vrot.lane.b32.xlu0 %v1781, 64
  %v1828 = vpop.permute.xlu0 %1827
  %1829 = vrot.lane.b32.xlu0 %v1782, 64
  %v1830 = vpop.permute.xlu0 %1829
  %v1847 = vadd.f32 %v1671, %v1800
  %v1848 = vadd.f32 %v1672, %v1802
  %v1849 = vadd.f32 %v1673, %v1804
  %v1850 = vadd.f32 %v1674, %v1806
  %v1851 = vadd.f32 %v1675, %v1808
  %v1852 = vadd.f32 %v1676, %v1810
  %v1853 = vadd.f32 %v1677, %v1812
  %v1854 = vadd.f32 %v1678, %v1814
  %v1855 = vadd.f32 %v1679, %v1816
  %v1856 = vadd.f32 %v1680, %v1818
  %v1857 = vadd.f32 %v1681, %v1820
  %v1858 = vadd.f32 %v1682, %v1822
  %v1859 = vadd.f32 %v1683, %v1824
  %v1860 = vadd.f32 %v1684, %v1826
  %v1861 = vadd.f32 %v1685, %v1828
  %v1862 = vadd.f32 %v1686, %v1830
  %v1863 = vpack.c.bf16 %v1848, %v1847
  %v1864 = vpack.c.bf16 %v1850, %v1849
  %v1865 = vpack.c.bf16 %v1852, %v1851
  %v1866 = vpack.c.bf16 %v1854, %v1853
  %v1867 = vpack.c.bf16 %v1856, %v1855
  %v1868 = vpack.c.bf16 %v1858, %v1857
  %v1869 = vpack.c.bf16 %v1860, %v1859
  %v1870 = vpack.c.bf16 %v1862, %v1861
  %v1871 = vld [vmem:[%s4] sm:$0xf]
  %v1872 = vld [vmem:[%s4 + $0x4] sm:$0xf]
  %v1873 = vld [vmem:[%s4 + $0x8] sm:$0xf]
  %v1874 = vld [vmem:[%s4 + $0xc] sm:$0xf]
  %v1875 = vld [vmem:[%s5] sm:$0x1]
  %v1877 = vlaneseq
  %v1878 = vshrl.u32 %v1877, 7
  %v1879 = vsub.s32 0, %v1878
  %v1880 = vrot.slane %v1875, %v1879
  %1890 = vrot.lane.b32.xlu0 %v1863, 64
  %v1891 = vpop.permute.xlu0 %1890
  %1892 = vrot.lane.b32.xlu0 %v1864, 64
  %v1893 = vpop.permute.xlu0 %1892
  %1894 = vrot.lane.b32.xlu0 %v1865, 64
  %v1895 = vpop.permute.xlu0 %1894
  %1896 = vrot.lane.b32.xlu0 %v1866, 64
  %v1897 = vpop.permute.xlu0 %1896
  %1898 = vrot.lane.b32.xlu0 %v1867, 64
  %v1899 = vpop.permute.xlu0 %1898
  %1900 = vrot.lane.b32.xlu0 %v1868, 64
  %v1901 = vpop.permute.xlu0 %1900
  %1902 = vrot.lane.b32.xlu0 %v1869, 64
  %v1903 = vpop.permute.xlu0 %1902
  %1904 = vrot.lane.b32.xlu0 %v1870, 64
  %v1905 = vpop.permute.xlu0 %1904
  %v1910 = vunpack.c.l.b16 %v1871
  %v1911 = vunpack.c.l.b16 %v1872
  %v1912 = vunpack.c.l.b16 %v1873
  %v1913 = vunpack.c.l.b16 %v1874
  %v1914 = vpack.c.b16 %v1911, %v1910
  %v1915 = vpack.c.b16 %v1913, %v1912
  %v1919 = vsel %vm1058, %v1891, 0
  %v1922 = vsel %vm1058, %v1893, 0
  %v1925 = vsel %vm1058, %v1895, 0
  %v1928 = vsel %vm1058, %v1897, 0
  %v1931 = vsel %vm1058, %v1899, 0
  %v1934 = vsel %vm1058, %v1901, 0
  %v1937 = vsel %vm1058, %v1903, 0
  %v1940 = vsel %vm1058, %v1905, 0
  %1942 = vmatprep.subr.bf16.mxu0 0
  %1943 = vmatpush1.bf16.msra.mxu0 %v1914
  %1944 = vmatprep.subr.bf16.mxu0 0
  %1945 = vmatpush1.bf16.msra.mxu0 %v1915
  %1946 = vmatprep.subr.bf16.mxu0 0
  %1947 = vmatpush1.bf16.msra.mxu0 0
  %1948 = vmatprep.subr.bf16.mxu0 0
  %1949 = vmatpush1.bf16.msra.mxu0 0
  %1950 = vmatprep.subr.bf16.mxu0 0
  %1951 = vmatpush1.bf16.msra.mxu0 0
  %1952 = vmatprep.subr.bf16.mxu0 0
  %1953 = vmatpush1.bf16.msra.mxu0 0
  %1954 = vmatprep.subr.bf16.mxu0 0
  %1955 = vmatpush1.bf16.msra.mxu0 0
  %1956 = vmatprep.subr.bf16.mxu0 0
  %1957 = vmatpush1.bf16.msra.mxu0 0
  %1958 = vmatprep.subr.bf16.mxu0 0
  %1959 = vmatpush1.bf16.msra.mxu0 0
  %1960 = vmatprep.subr.bf16.mxu0 0
  %1961 = vmatpush1.bf16.msra.mxu0 0
  %1962 = vmatprep.subr.bf16.mxu0 0
  %1963 = vmatpush1.bf16.msra.mxu0 0
  %1964 = vmatprep.subr.bf16.mxu0 0
  %1965 = vmatpush1.bf16.msra.mxu0 0
  %1966 = vmatprep.subr.bf16.mxu0 0
  %1967 = vmatpush1.bf16.msra.mxu0 0
  %1968 = vmatprep.subr.bf16.mxu0 0
  %1969 = vmatpush1.bf16.msra.mxu0 0
  %1970 = vmatprep.subr.bf16.mxu0 0
  %1971 = vmatpush1.bf16.msra.mxu0 0
  %1972 = vmatprep.subr.bf16.mxu0 0
  %1973 = vmatpush1.bf16.msra.mxu0 0
  %1974 = vmatprep.mubr.bf16.mxu0 0
  %1975 = vmatmul.mubr.bf16.gmra.mrb[0].mxu0 %v1919
  %v1976 = vpop.f32.mrb[0].mxu0
  %v1977 = vadd.f32 %v1880, %v1976
  %v1978 = vpop.f32.mrb[0].mxu0
  %v1979 = vpop.f32.mrb[0].mxu0
  %v1980 = vadd.f32 %v1880, %v1979
  %v1981 = vpop.f32.mrb[0].mxu0
  %1982 = vmatprep.mubr.bf16.mxu0 0
  %1983 = vmatmul.mubr.bf16.gmra.mrb[0].mxu0 %v1922
  %v1984 = vpop.f32.mrb[0].mxu0
  %v1985 = vadd.f32 %v1880, %v1984
  %v1986 = vpop.f32.mrb[0].mxu0
  %v1987 = vpop.f32.mrb[0].mxu0
  %v1988 = vadd.f32 %v1880, %v1987
  %v1989 = vpop.f32.mrb[0].mxu0
  %1990 = vmatprep.mubr.bf16.mxu0 0
  %1991 = vmatmul.mubr.bf16.gmra.mrb[0].mxu0 %v1925
  %v1992 = vpop.f32.mrb[0].mxu0
  %v1993 = vadd.f32 %v1880, %v1992
  %v1994 = vpop.f32.mrb[0].mxu0
  %v1995 = vpop.f32.mrb[0].mxu0
  %v1996 = vadd.f32 %v1880, %v1995
  %v1997 = vpop.f32.mrb[0].mxu0
  %1998 = vmatprep.mubr.bf16.mxu0 0
  %1999 = vmatmul.mubr.bf16.gmra.mrb[0].mxu0 %v1928
  %v2000 = vpop.f32.mrb[0].mxu0
  %v2001 = vadd.f32 %v1880, %v2000
  %v2002 = vpop.f32.mrb[0].mxu0
  %v2003 = vpop.f32.mrb[0].mxu0
  %v2004 = vadd.f32 %v1880, %v2003
  %v2005 = vpop.f32.mrb[0].mxu0
  %2006 = vmatprep.mubr.bf16.mxu0 0
  %2007 = vmatmul.mubr.bf16.gmra.mrb[0].mxu0 %v1931
  %v2008 = vpop.f32.mrb[0].mxu0
  %v2009 = vadd.f32 %v1880, %v2008
  %v2010 = vpop.f32.mrb[0].mxu0
  %v2011 = vpop.f32.mrb[0].mxu0
  %v2012 = vadd.f32 %v1880, %v2011
  %v2013 = vpop.f32.mrb[0].mxu0
  %2014 = vmatprep.mubr.bf16.mxu0 0
  %2015 = vmatmul.mubr.bf16.gmra.mrb[0].mxu0 %v1934
  %v2016 = vpop.f32.mrb[0].mxu0
  %v2017 = vadd.f32 %v1880, %v2016
  %v2018 = vpop.f32.mrb[0].mxu0
  %v2019 = vpop.f32.mrb[0].mxu0
  %v2020 = vadd.f32 %v1880, %v2019
  %v2021 = vpop.f32.mrb[0].mxu0
  %2022 = vmatprep.mubr.bf16.mxu0 0
  %2023 = vmatmul.mubr.bf16.gmra.mrb[0].mxu0 %v1937
  %v2024 = vpop.f32.mrb[0].mxu0
  %v2025 = vadd.f32 %v1880, %v2024
  %v2026 = vpop.f32.mrb[0].mxu0
  %v2027 = vpop.f32.mrb[0].mxu0
  %v2028 = vadd.f32 %v1880, %v2027
  %v2029 = vpop.f32.mrb[0].mxu0
  %2030 = vmatprep.mubr.bf16.mxu0 0
  %2031 = vmatmul.mubr.bf16.gmra.mrb[0].mxu0 %v1940
  %v2032 = vpop.f32.mrb[0].mxu0
  %v2033 = vadd.f32 %v1880, %v2032
  %v2034 = vpop.f32.mrb[0].mxu0
  %v2035 = vpop.f32.mrb[0].mxu0
  %v2036 = vadd.f32 %v1880, %v2035
  %v2037 = vpop.f32.mrb[0].mxu0
  %2038 = vdwg.mxu0
  %2039 = vxpose.xlu0.b32.start [1/16] %v1977, 128
  %2040 = vxpose.xlu0.b32.cont [2/16] %v1980, 128
  %2041 = vxpose.xlu0.b32.cont [3/16] %v1985, 128
  %2042 = vxpose.xlu0.b32.cont [4/16] %v1988, 128
  %2043 = vxpose.xlu0.b32.cont [5/16] %v1993, 128
  %2044 = vxpose.xlu0.b32.cont [6/16] %v1996, 128
  %2045 = vxpose.xlu0.b32.cont [7/16] %v2001, 128
  %2046 = vxpose.xlu0.b32.cont [8/16] %v2004, 128
  %2047 = vxpose.xlu0.b32.cont [9/16] 0.0, 128
  %2048 = vxpose.xlu0.b32.cont [10/16] 0.0, 128
  %2049 = vxpose.xlu0.b32.cont [11/16] 0.0, 128
  %2050 = vxpose.xlu0.b32.cont [12/16] 0.0, 128
  %2051 = vxpose.xlu0.b32.cont [13/16] 0.0, 128
  %2052 = vxpose.xlu0.b32.cont [14/16] 0.0, 128
  %2053 = vxpose.xlu0.b32.cont [15/16] 0.0, 128
  %2054 = vxpose.xlu0.b32.end [16/16] 0.0, 128
  %v2055 = vpop.trf.xlu0
  %v2056 = vpop.trf.xlu0
  %v2057 = vpop.trf.xlu0
  %v2058 = vpop.trf.xlu0
  %v2059 = vpop.trf.xlu0
  %v2060 = vpop.trf.xlu0
  %v2061 = vpop.trf.xlu0
  %v2062 = vpop.trf.xlu0
  %v2063 = vpop.trf.xlu0
  %v2064 = vpop.trf.xlu0
  %v2065 = vpop.trf.xlu0
  %v2066 = vpop.trf.xlu0
  %v2067 = vpop.trf.xlu0
  %v2068 = vpop.trf.xlu0
  %v2069 = vpop.trf.xlu0
  %v2070 = vpop.trf.xlu0
  %2071 = vst.msk [vmem:[%s6] sm:$0xff] %vm1350, %v2055
  %2072 = vst.msk [vmem:[%s6 + $0x8] sm:$0xff] %vm1350, %v2056
  %2073 = vxpose.xlu0.b32.start [1/16] %v2009, 128
  %2074 = vxpose.xlu0.b32.cont [2/16] %v2012, 128
  %2075 = vxpose.xlu0.b32.cont [3/16] %v2017, 128
  %2076 = vxpose.xlu0.b32.cont [4/16] %v2020, 128
  %2077 = vxpose.xlu0.b32.cont [5/16] %v2025, 128
  %2078 = vxpose.xlu0.b32.cont [6/16] %v2028, 128
  %2079 = vxpose.xlu0.b32.cont [7/16] %v2033, 128
  %2080 = vxpose.xlu0.b32.cont [8/16] %v2036, 128
  %2081 = vxpose.xlu0.b32.cont [9/16] 0.0, 128
  %2082 = vxpose.xlu0.b32.cont [10/16] 0.0, 128
  %2083 = vxpose.xlu0.b32.cont [11/16] 0.0, 128
  %2084 = vxpose.xlu0.b32.cont [12/16] 0.0, 128
  %2085 = vxpose.xlu0.b32.cont [13/16] 0.0, 128
  %2086 = vxpose.xlu0.b32.cont [14/16] 0.0, 128
  %2087 = vxpose.xlu0.b32.cont [15/16] 0.0, 128
  %2088 = vxpose.xlu0.b32.end [16/16] 0.0, 128
  %v2089 = vpop.trf.xlu0
  %v2090 = vpop.trf.xlu0
  %v2091 = vpop.trf.xlu0
  %v2092 = vpop.trf.xlu0
  %v2093 = vpop.trf.xlu0
  %v2094 = vpop.trf.xlu0
  %v2095 = vpop.trf.xlu0
  %v2096 = vpop.trf.xlu0
  %v2097 = vpop.trf.xlu0
  %v2098 = vpop.trf.xlu0
  %v2099 = vpop.trf.xlu0
  %v2100 = vpop.trf.xlu0
  %v2101 = vpop.trf.xlu0
  %v2102 = vpop.trf.xlu0
  %v2103 = vpop.trf.xlu0
  %v2104 = vpop.trf.xlu0
  %s2105 = scalar_lea.vmem %s6, 16
  %2106 = vst.msk [vmem:[%s2105] sm:$0xff] %vm1350, %v2089
  %2107 = vst.msk [vmem:[%s2105 + $0x8] sm:$0xff] %vm1350, %v2090
  // Predicated region
  $region26: #{attention_forward.1} parent=0 // pred_check
    _
  $region27: #{attention_forward.1} parent=0 // pred_check_branch
    %2109 = sbr.rel (0) target = $region29
  $region28: #{attention_forward.1} parent=0 // pred_region
    _
  $region29: #{attention_forward.1} parent=0 // pred_fallthru
    _
  // Predicated region
  $region30: #{attention_forward.1} parent=0 // pred_check
    _
  $region31: #{attention_forward.1} parent=0 // pred_check_branch
    %2111 = sbr.rel (0) target = $region33
  $region32: #{attention_forward.1} parent=0 // pred_region
    _
  $region33: #{attention_forward.1} parent=0 // pred_fallthru
    _

</llo_original>
